<compile_context>
chip_gen: v5e
topology: v5e:2x2
jax: 0.10.0
libtpu: 0.0.40
codegen_flags: <defaults>
</compile_context>

<pallas_src>
import functools

import numpy as np
import jax
import jax.numpy as jnp
from jax import lax
from jax.experimental import pallas as pl
from jax.experimental.pallas import tpu as pltpu


def _round_up(x, m):
    return ((x + m - 1) // m) * m


def _cdiv(a, b):
    return -(-a // b)


# ----------------------------- Pallas kernel ------------------------------ #
def _bottleneck_kernel(x_ref, hal_ref, w1_ref, w2_ref, b2_ref, w3_ref, b3_ref,
                       out_ref, *, halo, tile, wp, cin, cwp, cdt):
    x_t = x_ref[...]                                    # [C_pad, tile]
    hcols = hal_ref[0]                                  # [C_pad, 2*halo] = left|right halo cols
    w1 = w1_ref[...]

    # conv1 (1x1) + bn1 + relu.  bn1 scale is pre-folded into w1; bn1 shift rides
    # as the mask-channel column of w1, which also re-zeroes the padding ring
    # (so conv2's implicit zero padding is exact).
    h1_mid = jnp.maximum(
        jnp.dot(w1, x_t, preferred_element_type=jnp.float32), 0.0).astype(cdt)
    h1_hal = jnp.maximum(
        jnp.dot(w1, hcols, preferred_element_type=jnp.float32), 0.0).astype(cdt)
    # halo-extended conv1 output; all concat boundaries are multiples of 128 lanes.
    h1_ext = jnp.concatenate(
        [h1_hal[:, :halo], h1_mid, h1_hal[:, halo:]], axis=-1)  # [Cw_pad, tile+2*halo]

    # conv2 (3x3, padding=1) + bn2 + relu: nine accumulating MXU dots (no
    # sublane-concat im2col; K is tiny so the MXU has plenty of slack).
    acc = jnp.zeros((cwp, tile), jnp.float32)
    for ky in range(3):
        for kx in range(3):
            off = halo + (ky - 1) * wp + (kx - 1)
            acc = acc + jnp.dot(w2_ref[ky * 3 + kx], h1_ext[:, off:off + tile],
                                preferred_element_type=jnp.float32)
    h2 = jnp.maximum(acc + b2_ref[...], 0.0).astype(cdt)   # bn2 shift + relu
    # (F.dropout(p=0.1) is the identity in eval mode.)

    # conv3 (1x1) + bn3 (scale folded into w3, shift added here).
    h3 = jnp.dot(w3_ref[...], h2, preferred_element_type=jnp.float32) + b3_ref[...]

    # residual add (identity path, inplanes == cout) + relu; lane-dense store.
    identity = x_t[:cin, :].astype(jnp.float32)
    out_ref[...] = jnp.maximum(h3 + identity, 0.0).astype(out_ref.dtype)


# ------------------------------- wrapper ----------------------------------- #
def bottleneck_forward(x_nchw, w1, w2, w3, bn_scales, bn_shifts, *,
                       max_tile=8192, compute_dtype=jnp.bfloat16, out_dtype=None):
    """Inference forward of _ResnetBottleneck (stride=1, downsample=None).

    x_nchw: [B, Cin, H, W] (PyTorch NCHW); w1/w2/w3 in OIHW layout.
    bn_scales/bn_shifts: per-stage inference BN affine (y = x*scale + shift).
    compute_dtype: matmul / activation-traffic dtype (bf16 default; f32 accumulate).
    out_dtype: kernel output dtype (defaults to x dtype).
    """
    B, Cin, H, W = x_nchw.shape
    Cw = w1.shape[0]
    Co = w3.shape[0]
    assert Cin == Co, "residual add requires inplanes == planes * expansion"
    out_dtype = x_nchw.dtype if out_dtype is None else out_dtype

    Hp, Wp = H + 2, W + 2
    Npad = B * Hp * Wp
    HALO = _round_up(Wp + 1, 128)        # conv2 taps reach +-(Wp+1); lane-aligned halo

    # channel padding to the dtype sublane tile (8 rows f32, 16 rows bf16)
    sub = 16 if jnp.dtype(compute_dtype).itemsize < 4 else 8
    C_pad = _round_up(Cin + 1, sub)      # Cin channels + 1 mask/bn1-shift channel
    Cw_pad = _round_up(Cw, sub)

    # lane-dense tiles over the flat spatial axis; keep >=2 grid steps so the
    # "parallel" axis can shard across v7x's two TensorCores.
    n_tiles = max(2, _cdiv(Npad, max_tile))
    tile = max(_round_up(_cdiv(Npad, n_tiles), 128), HALO)
    n_tiles = _cdiv(Npad, tile)
    ntot = n_tiles * tile

    f32 = jnp.float32
    # NCHW -> zero-padded, channel-major flat layout [C_pad, ntot]:
    #   rows [0:Cin]   = zero-padded input channels
    #   row  Cin       = mask channel (1 inside image, 0 on ring) -> carries bn1 shift
    #   rows Cin+1:    = zero (sublane padding)
    xp = jnp.pad(x_nchw.astype(f32), ((0, 0), (0, 0), (1, 1), (1, 1)))
    xf = jnp.transpose(xp, (1, 0, 2, 3)).reshape(Cin, Npad)
    mf = jnp.pad(jnp.ones((1, B, H, W), f32),
                 ((0, 0), (0, 0), (1, 1), (1, 1))).reshape(1, Npad)
    xa = jnp.concatenate([xf, mf, jnp.zeros((C_pad - Cin - 1, Npad), f32)], axis=0)
    xe = jnp.pad(xa, ((0, 0), (0, ntot - Npad))).astype(compute_dtype)   # [C_pad, ntot]

    # tiny side array with just the halo boundary columns of each tile
    # (the main activation is read exactly once, non-overlapping blocks).
    zcol = jnp.zeros((C_pad, HALO), compute_dtype)
    halo_cols = []
    for t in range(n_tiles):
        left = zcol if t == 0 else xe[:, t * tile - HALO: t * tile]
        right = zcol if t == n_tiles - 1 else xe[:, (t + 1) * tile: (t + 1) * tile + HALO]
        halo_cols.append(jnp.concatenate([left, right], axis=-1))
    halos = jnp.stack(halo_cols, axis=0)                # [n_tiles, C_pad, 2*HALO]

    # fold BN scales into the conv weights; shifts become bias columns / vectors
    s1, s2, s3 = [jnp.asarray(s, f32) for s in bn_scales]
    t1, t2, t3 = [jnp.asarray(t, f32) for t in bn_shifts]
    w1s = w1[:, :, 0, 0].astype(f32) * s1[:, None]                        # [Cw, Cin]
    w1a = jnp.zeros((Cw_pad, C_pad), f32)
    w1a = w1a.at[:Cw, :Cin].set(w1s).at[:Cw, Cin].set(t1).astype(compute_dtype)
    w2s = w2.astype(f32) * s2[:, None, None, None]                        # [Cw, Cw, 3, 3]
    w2t = jnp.zeros((9, Cw_pad, Cw_pad), f32)
    w2t = w2t.at[:, :Cw, :Cw].set(
        jnp.transpose(w2s, (2, 3, 0, 1)).reshape(9, Cw, Cw)).astype(compute_dtype)
    w3m = jnp.zeros((Co, Cw_pad), f32)
    w3m = w3m.at[:, :Cw].set(w3[:, :, 0, 0].astype(f32) * s3[:, None]).astype(compute_dtype)
    b2 = jnp.zeros((Cw_pad, 1), f32).at[:Cw, 0].set(t2)                   # [Cw_pad, 1]
    b3 = t3[:, None]                                                      # [Co, 1]

    kernel = functools.partial(_bottleneck_kernel, halo=HALO, tile=tile,
                               wp=Wp, cin=Cin, cwp=Cw_pad, cdt=compute_dtype)
    out_flat = pl.pallas_call(
        kernel,
        out_shape=jax.ShapeDtypeStruct((Co, ntot), out_dtype),
        grid=(n_tiles,),
        in_specs=[
            pl.BlockSpec((C_pad, tile), lambda t: (0, t)),          # x (non-overlapping)
            pl.BlockSpec((1, C_pad, 2 * HALO), lambda t: (t, 0, 0)),  # halo boundary cols
            pl.BlockSpec((Cw_pad, C_pad), lambda t: (0, 0)),        # w1 (+bn1 shift col)
            pl.BlockSpec((9, Cw_pad, Cw_pad), lambda t: (0, 0, 0)),  # w2 taps
            pl.BlockSpec((Cw_pad, 1), lambda t: (0, 0)),            # bn2 shift
            pl.BlockSpec((Co, Cw_pad), lambda t: (0, 0)),           # w3
            pl.BlockSpec((Co, 1), lambda t: (0, 0)),                # bn3 shift
        ],
        out_specs=pl.BlockSpec((Co, tile), lambda t: (0, t)),
        compiler_params=pltpu.CompilerParams(
            dimension_semantics=("parallel",),
            vmem_limit_bytes=32 * 1024 * 1024,   # safe on v5e/v6e and v7x's 64 MiB VMEM
        ),
    )(xe, halos, w1a, w2t, b2, w3m, b3)

    # drop the padding ring / tail and return NCHW.  (When chaining bottlenecks,
    # keep the channel-major flat layout instead and skip this.)
    out = out_flat[:, :Npad].reshape(Co, B, Hp, Wp)[:, :, 1:H + 1, 1:W + 1]
    return jnp.transpose(out, (1, 0, 2, 3)).astype(out_dtype)   # [B, Co, H, W]


# jit the whole forward end-to-end (layout prep + kernel + crop fuse into one program)
bottleneck_forward_jit = jax.jit(
    bottleneck_forward, static_argnames=("max_tile", "compute_dtype", "out_dtype"))


# --------------------------- pure-JAX reference ----------------------------- #
def ref_forward(x, w1, w2, w3, bn_scales, bn_shifts):
    def bn(y, s, t):
        return y * s[None, :, None, None] + t[None, :, None, None]
    dn = ('NCHW', 'OIHW', 'NCHW')
    h = lax.conv_general_dilated(x, w1, (1, 1), 'VALID', dimension_numbers=dn)
    h = jax.nn.relu(bn(h, bn_scales[0], bn_shifts[0]))
    h = lax.conv_general_dilated(h, w2, (1, 1), ((1, 1), (1, 1)), dimension_numbers=dn)
    h = jax.nn.relu(bn(h, bn_scales[1], bn_shifts[1]))
    h = lax.conv_general_dilated(h, w3, (1, 1), 'VALID', dimension_numbers=dn)
    h = bn(h, bn_scales[2], bn_shifts[2])
    return jax.nn.relu(h + x)


def xavier_uniform(key, shape):
    # shape is OIHW (PyTorch conv weight)
    fan_out = shape[0] * shape[2] * shape[3]
    fan_in = shape[1] * shape[2] * shape[3]
    bound = float(np.sqrt(6.0 / (fan_in + fan_out)))
    return jax.random.uniform(key, shape, jnp.float32, -bound, bound)


if __name__ == "__main__":
    # module configuration: _ResnetBottleneck(inplanes=16, planes=4)
    B, H, W = 2, 16, 16
    inplanes, planes, expansion = 16, 4, 4
    width = int(planes * (64 / 64.0)) * 1      # = 4
    cout = planes * expansion                  # = 16 == inplanes

    key = jax.random.PRNGKey(0)
    k1, k2, k3, kx = jax.random.split(key, 4)
    w1 = xavier_uniform(k1, (width, inplanes, 1, 1))
    w2 = xavier_uniform(k2, (width, width, 3, 3))
    w3 = xavier_uniform(k3, (cout, width, 1, 1))
    x = jax.random.normal(kx, (B, inplanes, H, W), jnp.float32)

    # inference-mode BN: scale = gamma/sqrt(var+eps), shift = beta - mean*scale
    eps = 1e-5
    inv = 1.0 / np.sqrt(1.0 + eps)
    # module init: bn1.weight=bn2.weight=1, bn3.weight=0, all biases 0, stats (0,1)
    scales = (jnp.full((width,), inv, jnp.float32),
              jnp.full((width,), inv, jnp.float32),
              jnp.zeros((cout,), jnp.float32))
    shifts = (jnp.zeros((width,), jnp.float32),
              jnp.zeros((width,), jnp.float32),
              jnp.zeros((cout,), jnp.float32))
    # extra config with bn3.weight=1 so the conv branch is non-degenerate
    scales_nz = (scales[0], scales[1], jnp.full((cout,), inv, jnp.float32))

    ref0 = ref_forward(x, w1, w2, w3, scales, shifts)
    ref1 = ref_forward(x, w1, w2, w3, scales_nz, shifts)

    # float32 compute path: strict check
    out0 = jax.block_until_ready(bottleneck_forward_jit(
        x, w1, w2, w3, scales, shifts, compute_dtype=jnp.float32))
    out1 = jax.block_until_ready(bottleneck_forward_jit(
        x, w1, w2, w3, scales_nz, shifts, compute_dtype=jnp.float32))
    assert out0.shape == (B, cout, H, W)
    np.testing.assert_allclose(np.asarray(out0), np.asarray(ref0), rtol=2e-4, atol=2e-4)
    np.testing.assert_allclose(np.asarray(out1), np.asarray(ref1), rtol=2e-4, atol=2e-4)

    # default bf16 activation-traffic path (f32 accumulation), bf16 output: loose check
    outb = jax.block_until_ready(bottleneck_forward_jit(
        x, w1, w2, w3, scales_nz, shifts, out_dtype=jnp.bfloat16))
    np.testing.assert_allclose(np.asarray(outb.astype(jnp.float32)),
                               np.asarray(ref1), rtol=5e-2, atol=5e-2)

    print("KERNEL_OK")
</pallas_src>

<mosaic_0001>
module attributes {stable_mosaic.version = 11 : i64} {
  func.func @_bottleneck_kernel(%arg0: i32, %arg1: memref<24x384xf32, #tpu.memory_space<vmem>>, %arg2: memref<1x24x256xf32, #tpu.memory_space<vmem>>, %arg3: memref<8x24xf32, #tpu.memory_space<vmem>>, %arg4: memref<9x8x8xf32, #tpu.memory_space<vmem>>, %arg5: memref<8x1xf32, #tpu.memory_space<vmem>>, %arg6: memref<16x8xf32, #tpu.memory_space<vmem>>, %arg7: memref<16x1xf32, #tpu.memory_space<vmem>>, %arg8: memref<16x384xf32, #tpu.memory_space<vmem>>) attributes {dimension_semantics = [#tpu.dimension_semantics<parallel>], iteration_bounds = array<i64: 2>, scalar_prefetch = 0 : i64, scratch_operands = 0 : i64, tpu.core_type = #tpu.core_type<tc>, window_params = [{transform_indices = @transform_0, window_bounds = array<i64: 24, 384>}, {transform_indices = @transform_1, window_bounds = array<i64: 1, 24, 256>}, {pipeline_mode = #tpu.pipeline_mode<synchronous>, transform_indices = @transform_2, window_bounds = array<i64: 8, 24>}, {pipeline_mode = #tpu.pipeline_mode<synchronous>, transform_indices = @transform_3, window_bounds = array<i64: 9, 8, 8>}, {pipeline_mode = #tpu.pipeline_mode<synchronous>, transform_indices = @transform_4, window_bounds = array<i64: 8, 1>}, {pipeline_mode = #tpu.pipeline_mode<synchronous>, transform_indices = @transform_5, window_bounds = array<i64: 16, 8>}, {pipeline_mode = #tpu.pipeline_mode<synchronous>, transform_indices = @transform_6, window_bounds = array<i64: 16, 1>}, {transform_indices = @transform_7, window_bounds = array<i64: 16, 384>}]} {
    %c0 = arith.constant 0 : index
    %c0_0 = arith.constant 0 : index
    %0 = vector.load %arg1[%c0, %c0_0] : memref<24x384xf32, #tpu.memory_space<vmem>>, vector<24x384xf32>
    %c0_1 = arith.constant 0 : index
    %c0_2 = arith.constant 0 : index
    %c0_3 = arith.constant 0 : index
    %1 = vector.load %arg2[%c0_1, %c0_2, %c0_3] : memref<1x24x256xf32, #tpu.memory_space<vmem>>, vector<1x24x256xf32>
    %2 = vector.shape_cast %1 : vector<1x24x256xf32> to vector<24x256xf32>
    %c0_4 = arith.constant 0 : index
    %c0_5 = arith.constant 0 : index
    %3 = vector.load %arg3[%c0_4, %c0_5] : memref<8x24xf32, #tpu.memory_space<vmem>>, vector<8x24xf32>
    %cst = arith.constant dense<0.000000e+00> : vector<8x384xf32>
    %4 = tpu.matmul %3, %0, %cst {dimension_numbers = #tpu.dot_dimension_numbers<[1], [0], [0], [1], [0, 0, 1, 1], [], []>} : vector<8x24xf32>, vector<24x384xf32>, vector<8x384xf32> -> vector<8x384xf32>
    %cst_6 = arith.constant 0.000000e+00 : f32
    %5 = vector.broadcast %cst_6 : f32 to vector<8x384xf32>
    %6 = arith.maximumf %4, %5 : vector<8x384xf32>
    %cst_7 = arith.constant dense<0.000000e+00> : vector<8x256xf32>
    %7 = tpu.matmul %3, %2, %cst_7 {dimension_numbers = #tpu.dot_dimension_numbers<[1], [0], [0], [1], [0, 0, 1, 1], [], []>} : vector<8x24xf32>, vector<24x256xf32>, vector<8x256xf32> -> vector<8x256xf32>
    %cst_8 = arith.constant 0.000000e+00 : f32
    %8 = vector.broadcast %cst_8 : f32 to vector<8x256xf32>
    %9 = arith.maximumf %7, %8 : vector<8x256xf32>
    %10 = vector.extract_strided_slice %9 {offsets = [0, 0], sizes = [8, 128], strides = [1, 1]} : vector<8x256xf32> to vector<8x128xf32>
    %11 = vector.extract_strided_slice %9 {offsets = [0, 128], sizes = [8, 128], strides = [1, 1]} : vector<8x256xf32> to vector<8x128xf32>
    %12 = tpu.concatenate %10, %6, %11 in 1 : vector<8x128xf32>, vector<8x384xf32>, vector<8x128xf32> -> vector<8x640xf32>
    %cst_9 = arith.constant 0.000000e+00 : f32
    %13 = vector.broadcast %cst_9 : f32 to vector<8x384xf32>
    %c0_10 = arith.constant 0 : index
    %c0_11 = arith.constant 0 : index
    %c0_12 = arith.constant 0 : index
    %14 = vector.load %arg4[%c0_10, %c0_11, %c0_12] : memref<9x8x8xf32, #tpu.memory_space<vmem>>, vector<1x8x8xf32>
    %15 = vector.shape_cast %14 : vector<1x8x8xf32> to vector<8x8xf32>
    %16 = vector.extract_strided_slice %12 {offsets = [0, 109], sizes = [8, 384], strides = [1, 1]} : vector<8x640xf32> to vector<8x384xf32>
    %cst_13 = arith.constant dense<0.000000e+00> : vector<8x384xf32>
    %17 = tpu.matmul %15, %16, %cst_13 {dimension_numbers = #tpu.dot_dimension_numbers<[1], [0], [0], [1], [0, 0, 1, 1], [], []>} : vector<8x8xf32>, vector<8x384xf32>, vector<8x384xf32> -> vector<8x384xf32>
    %18 = arith.addf %13, %17 : vector<8x384xf32>
    %c1 = arith.constant 1 : index
    %c0_14 = arith.constant 0 : index
    %c0_15 = arith.constant 0 : index
    %19 = vector.load %arg4[%c1, %c0_14, %c0_15] : memref<9x8x8xf32, #tpu.memory_space<vmem>>, vector<1x8x8xf32>
    %20 = vector.shape_cast %19 : vector<1x8x8xf32> to vector<8x8xf32>
    %21 = vector.extract_strided_slice %12 {offsets = [0, 110], sizes = [8, 384], strides = [1, 1]} : vector<8x640xf32> to vector<8x384xf32>
    %cst_16 = arith.constant dense<0.000000e+00> : vector<8x384xf32>
    %22 = tpu.matmul %20, %21, %cst_16 {dimension_numbers = #tpu.dot_dimension_numbers<[1], [0], [0], [1], [0, 0, 1, 1], [], []>} : vector<8x8xf32>, vector<8x384xf32>, vector<8x384xf32> -> vector<8x384xf32>
    %23 = arith.addf %18, %22 : vector<8x384xf32>
    %c2 = arith.constant 2 : index
    %c0_17 = arith.constant 0 : index
    %c0_18 = arith.constant 0 : index
    %24 = vector.load %arg4[%c2, %c0_17, %c0_18] : memref<9x8x8xf32, #tpu.memory_space<vmem>>, vector<1x8x8xf32>
    %25 = vector.shape_cast %24 : vector<1x8x8xf32> to vector<8x8xf32>
    %26 = vector.extract_strided_slice %12 {offsets = [0, 111], sizes = [8, 384], strides = [1, 1]} : vector<8x640xf32> to vector<8x384xf32>
    %cst_19 = arith.constant dense<0.000000e+00> : vector<8x384xf32>
    %27 = tpu.matmul %25, %26, %cst_19 {dimension_numbers = #tpu.dot_dimension_numbers<[1], [0], [0], [1], [0, 0, 1, 1], [], []>} : vector<8x8xf32>, vector<8x384xf32>, vector<8x384xf32> -> vector<8x384xf32>
    %28 = arith.addf %23, %27 : vector<8x384xf32>
    %c3 = arith.constant 3 : index
    %c0_20 = arith.constant 0 : index
    %c0_21 = arith.constant 0 : index
    %29 = vector.load %arg4[%c3, %c0_20, %c0_21] : memref<9x8x8xf32, #tpu.memory_space<vmem>>, vector<1x8x8xf32>
    %30 = vector.shape_cast %29 : vector<1x8x8xf32> to vector<8x8xf32>
    %31 = vector.extract_strided_slice %12 {offsets = [0, 127], sizes = [8, 384], strides = [1, 1]} : vector<8x640xf32> to vector<8x384xf32>
    %cst_22 = arith.constant dense<0.000000e+00> : vector<8x384xf32>
    %32 = tpu.matmul %30, %31, %cst_22 {dimension_numbers = #tpu.dot_dimension_numbers<[1], [0], [0], [1], [0, 0, 1, 1], [], []>} : vector<8x8xf32>, vector<8x384xf32>, vector<8x384xf32> -> vector<8x384xf32>
    %33 = arith.addf %28, %32 : vector<8x384xf32>
    %c4 = arith.constant 4 : index
    %c0_23 = arith.constant 0 : index
    %c0_24 = arith.constant 0 : index
    %34 = vector.load %arg4[%c4, %c0_23, %c0_24] : memref<9x8x8xf32, #tpu.memory_space<vmem>>, vector<1x8x8xf32>
    %35 = vector.shape_cast %34 : vector<1x8x8xf32> to vector<8x8xf32>
    %36 = vector.extract_strided_slice %12 {offsets = [0, 128], sizes = [8, 384], strides = [1, 1]} : vector<8x640xf32> to vector<8x384xf32>
    %cst_25 = arith.constant dense<0.000000e+00> : vector<8x384xf32>
    %37 = tpu.matmul %35, %36, %cst_25 {dimension_numbers = #tpu.dot_dimension_numbers<[1], [0], [0], [1], [0, 0, 1, 1], [], []>} : vector<8x8xf32>, vector<8x384xf32>, vector<8x384xf32> -> vector<8x384xf32>
    %38 = arith.addf %33, %37 : vector<8x384xf32>
    %c5 = arith.constant 5 : index
    %c0_26 = arith.constant 0 : index
    %c0_27 = arith.constant 0 : index
    %39 = vector.load %arg4[%c5, %c0_26, %c0_27] : memref<9x8x8xf32, #tpu.memory_space<vmem>>, vector<1x8x8xf32>
    %40 = vector.shape_cast %39 : vector<1x8x8xf32> to vector<8x8xf32>
    %41 = vector.extract_strided_slice %12 {offsets = [0, 129], sizes = [8, 384], strides = [1, 1]} : vector<8x640xf32> to vector<8x384xf32>
    %cst_28 = arith.constant dense<0.000000e+00> : vector<8x384xf32>
    %42 = tpu.matmul %40, %41, %cst_28 {dimension_numbers = #tpu.dot_dimension_numbers<[1], [0], [0], [1], [0, 0, 1, 1], [], []>} : vector<8x8xf32>, vector<8x384xf32>, vector<8x384xf32> -> vector<8x384xf32>
    %43 = arith.addf %38, %42 : vector<8x384xf32>
    %c6 = arith.constant 6 : index
    %c0_29 = arith.constant 0 : index
    %c0_30 = arith.constant 0 : index
    %44 = vector.load %arg4[%c6, %c0_29, %c0_30] : memref<9x8x8xf32, #tpu.memory_space<vmem>>, vector<1x8x8xf32>
    %45 = vector.shape_cast %44 : vector<1x8x8xf32> to vector<8x8xf32>
    %46 = vector.extract_strided_slice %12 {offsets = [0, 145], sizes = [8, 384], strides = [1, 1]} : vector<8x640xf32> to vector<8x384xf32>
    %cst_31 = arith.constant dense<0.000000e+00> : vector<8x384xf32>
    %47 = tpu.matmul %45, %46, %cst_31 {dimension_numbers = #tpu.dot_dimension_numbers<[1], [0], [0], [1], [0, 0, 1, 1], [], []>} : vector<8x8xf32>, vector<8x384xf32>, vector<8x384xf32> -> vector<8x384xf32>
    %48 = arith.addf %43, %47 : vector<8x384xf32>
    %c7 = arith.constant 7 : index
    %c0_32 = arith.constant 0 : index
    %c0_33 = arith.constant 0 : index
    %49 = vector.load %arg4[%c7, %c0_32, %c0_33] : memref<9x8x8xf32, #tpu.memory_space<vmem>>, vector<1x8x8xf32>
    %50 = vector.shape_cast %49 : vector<1x8x8xf32> to vector<8x8xf32>
    %51 = vector.extract_strided_slice %12 {offsets = [0, 146], sizes = [8, 384], strides = [1, 1]} : vector<8x640xf32> to vector<8x384xf32>
    %cst_34 = arith.constant dense<0.000000e+00> : vector<8x384xf32>
    %52 = tpu.matmul %50, %51, %cst_34 {dimension_numbers = #tpu.dot_dimension_numbers<[1], [0], [0], [1], [0, 0, 1, 1], [], []>} : vector<8x8xf32>, vector<8x384xf32>, vector<8x384xf32> -> vector<8x384xf32>
    %53 = arith.addf %48, %52 : vector<8x384xf32>
    %c8 = arith.constant 8 : index
    %c0_35 = arith.constant 0 : index
    %c0_36 = arith.constant 0 : index
    %54 = vector.load %arg4[%c8, %c0_35, %c0_36] : memref<9x8x8xf32, #tpu.memory_space<vmem>>, vector<1x8x8xf32>
    %55 = vector.shape_cast %54 : vector<1x8x8xf32> to vector<8x8xf32>
    %56 = vector.extract_strided_slice %12 {offsets = [0, 147], sizes = [8, 384], strides = [1, 1]} : vector<8x640xf32> to vector<8x384xf32>
    %cst_37 = arith.constant dense<0.000000e+00> : vector<8x384xf32>
    %57 = tpu.matmul %55, %56, %cst_37 {dimension_numbers = #tpu.dot_dimension_numbers<[1], [0], [0], [1], [0, 0, 1, 1], [], []>} : vector<8x8xf32>, vector<8x384xf32>, vector<8x384xf32> -> vector<8x384xf32>
    %58 = arith.addf %53, %57 : vector<8x384xf32>
    %c0_38 = arith.constant 0 : index
    %c0_39 = arith.constant 0 : index
    %59 = vector.load %arg5[%c0_38, %c0_39] : memref<8x1xf32, #tpu.memory_space<vmem>>, vector<8x1xf32>
    %60 = vector.broadcast %59 : vector<8x1xf32> to vector<8x384xf32>
    %61 = arith.addf %58, %60 : vector<8x384xf32>
    %cst_40 = arith.constant 0.000000e+00 : f32
    %62 = vector.broadcast %cst_40 : f32 to vector<8x384xf32>
    %63 = arith.maximumf %61, %62 : vector<8x384xf32>
    %c0_41 = arith.constant 0 : index
    %c0_42 = arith.constant 0 : index
    %64 = vector.load %arg6[%c0_41, %c0_42] : memref<16x8xf32, #tpu.memory_space<vmem>>, vector<16x8xf32>
    %cst_43 = arith.constant dense<0.000000e+00> : vector<16x384xf32>
    %65 = tpu.matmul %64, %63, %cst_43 {dimension_numbers = #tpu.dot_dimension_numbers<[1], [0], [0], [1], [0, 0, 1, 1], [], []>} : vector<16x8xf32>, vector<8x384xf32>, vector<16x384xf32> -> vector<16x384xf32>
    %c0_44 = arith.constant 0 : index
    %c0_45 = arith.constant 0 : index
    %66 = vector.load %arg7[%c0_44, %c0_45] : memref<16x1xf32, #tpu.memory_space<vmem>>, vector<16x1xf32>
    %67 = vector.broadcast %66 : vector<16x1xf32> to vector<16x384xf32>
    %68 = arith.addf %65, %67 : vector<16x384xf32>
    %69 = vector.extract_strided_slice %0 {offsets = [0, 0], sizes = [16, 384], strides = [1, 1]} : vector<24x384xf32> to vector<16x384xf32>
    %70 = arith.addf %68, %69 : vector<16x384xf32>
    %cst_46 = arith.constant 0.000000e+00 : f32
    %71 = vector.broadcast %cst_46 : f32 to vector<16x384xf32>
    %72 = arith.maximumf %70, %71 : vector<16x384xf32>
    %c0_47 = arith.constant 0 : index
    %c0_48 = arith.constant 0 : index
    %73 = vector.load %arg8[%c0_47, %c0_48] : memref<16x384xf32, #tpu.memory_space<vmem>>, vector<16x384xf32>
    tpu.vector_store %arg8[%c0_47, %c0_48], %72 {strides = array<i32>} : memref<16x384xf32, #tpu.memory_space<vmem>>, vector<16x384xf32>,
    return
  }
  func.func @transform_0(%arg0: i32) -> (i32, i32) {
    %c0_i32 = arith.constant 0 : i32
    %c0_i32_0 = arith.constant 0 : i32
    return %c0_i32, %arg0 : i32, i32
  }
  func.func @transform_1(%arg0: i32) -> (i32, i32, i32) {
    %c0_i32 = arith.constant 0 : i32
    %c0_i32_0 = arith.constant 0 : i32
    %c0_i32_1 = arith.constant 0 : i32
    return %arg0, %c0_i32, %c0_i32_0 : i32, i32, i32
  }
  func.func @transform_2(%arg0: i32) -> (i32, i32) {
    %c0_i32 = arith.constant 0 : i32
    %c0_i32_0 = arith.constant 0 : i32
    %c0_i32_1 = arith.constant 0 : i32
    return %c0_i32, %c0_i32_0 : i32, i32
  }
  func.func @transform_3(%arg0: i32) -> (i32, i32, i32) {
    %c0_i32 = arith.constant 0 : i32
    %c0_i32_0 = arith.constant 0 : i32
    %c0_i32_1 = arith.constant 0 : i32
    %c0_i32_2 = arith.constant 0 : i32
    return %c0_i32, %c0_i32_0, %c0_i32_1 : i32, i32, i32
  }
  func.func @transform_4(%arg0: i32) -> (i32, i32) {
    %c0_i32 = arith.constant 0 : i32
    %c0_i32_0 = arith.constant 0 : i32
    %c0_i32_1 = arith.constant 0 : i32
    return %c0_i32, %c0_i32_0 : i32, i32
  }
  func.func @transform_5(%arg0: i32) -> (i32, i32) {
    %c0_i32 = arith.constant 0 : i32
    %c0_i32_0 = arith.constant 0 : i32
    %c0_i32_1 = arith.constant 0 : i32
    return %c0_i32, %c0_i32_0 : i32, i32
  }
  func.func @transform_6(%arg0: i32) -> (i32, i32) {
    %c0_i32 = arith.constant 0 : i32
    %c0_i32_0 = arith.constant 0 : i32
    %c0_i32_1 = arith.constant 0 : i32
    return %c0_i32, %c0_i32_0 : i32, i32
  }
  func.func @transform_7(%arg0: i32) -> (i32, i32) {
    %c0_i32 = arith.constant 0 : i32
    %c0_i32_0 = arith.constant 0 : i32
    return %c0_i32, %arg0 : i32, i32
  }
}

</mosaic_0001>

<llo_original>
// kernel: bottleneck_forward.1
$region0: #{bottleneck_forward.1}
  #allocation0 [shape = 'u32[]', space=smem, size = 0x4, offset = 0x4, fixed_abs, tag = 'smem constant byte address 0x4 - core index']
  #allocation1 [shape = 'u32[72,128]{1,0:T(1,128)}', space=vmem, size = 0x9000, scoped, tag = 'internal scratch']
  %s0 = inlined_call_operand.vmem [shape: f32[24,768], index: 0, kind: input, shape index: {}]
  %s1 = inlined_call_operand.vmem [shape: f32[2,24,256], index: 1, kind: input, shape index: {}]
  %s2 = inlined_call_operand.vmem [shape: f32[8,24], index: 2, kind: input, shape index: {}]
  %s3 = inlined_call_operand.vmem [shape: f32[9,8,8], index: 3, kind: input, shape index: {}]
  %s4 = inlined_call_operand.vmem [shape: f32[8,1], index: 4, kind: input, shape index: {}]
  %s5 = inlined_call_operand.vmem [shape: f32[16,8], index: 5, kind: input, shape index: {}]
  %s6 = inlined_call_operand.vmem [shape: f32[16,1], index: 6, kind: input, shape index: {}]
  %s7 = inlined_call_operand.vmem [shape: f32[16,768], index: 7, kind: output, shape index: {}]
  %s8 = sld [smem:[#allocation0]]
  $region103: #{bottleneck_forward.1} parent=0
    _
  %s10 = ssub.s32 1, %s8
  %s11 = scalar_select 0, %s10, %s8
  $region1: #{bottleneck_forward.1} parent=0
    #allocation2 [shape = 'u8[73728]{0}', space=vmem, size = 0x12000, scoped, tag = 'input window, operand 0']
    #allocation3 [shape = 'u8[49152]{0}', space=vmem, size = 0xc000, scoped, tag = 'output window, operand 0']
    loop: start=0, step=1, limit=4
    $region2: #{bottleneck_forward.1} parent=1 // loop_pre_header
      _
    $region3: #{bottleneck_forward.1} parent=1 // loop_header
      %s13 = sphi 0, %s17
      %p14 = scmp.ge.s32.totalorder %s13, 4
      %s23 = sphi 0, %s25
      %s26 = sphi 0, %s23
      %s27 = sphi 0, %s26
      %s43 = sphi 0, %s27
      %s49 = sphi 0, %s51
      %s52 = sphi 0, %s49
      %s53 = sphi 0, %s52
      %s69 = sphi 0, %s53
      %s73 = sphi 0, %s73
      %s75 = sphi 0, %s73
      %s76 = sphi 0, %s75
      %s90 = sphi 0, %s76
      %s94 = sphi 0, %s94
      %s96 = sphi 0, %s94
      %s97 = sphi 0, %s96
      %s111 = sphi 0, %s97
      %s115 = sphi 0, %s115
      %s117 = sphi 0, %s115
      %s118 = sphi 0, %s117
      %s132 = sphi 0, %s118
      %s136 = sphi 0, %s136
      %s138 = sphi 0, %s136
      %s139 = sphi 0, %s138
      %s153 = sphi 0, %s139
      %s157 = sphi 0, %s157
      %s159 = sphi 0, %s157
      %s160 = sphi 0, %s159
      %s174 = sphi 0, %s160
      %s180 = sphi 0, %s182
      %s183 = sphi 0, %s180
      %s184 = sphi 0, %s183
      %s200 = sphi 0, %s184
    $region4: #{bottleneck_forward.1} parent=1 // loop_header_branch
      %16 = sbr.rel (%p14) target = $region8
    $region5: #{bottleneck_forward.1} parent=1 // loop_body
      %s18 = ssub.s32 %s13, 1
      %s19 = ssub.s32 %s13, 2
      %s20 = sadd.s32 %s13, 1
      %s21 = ssub.s32 %s13, %s20
      %p22 = scmp.eq.s32.totalorder %s21, 0
      %s24 = sadd.s32 %s23, 1
      %s25 = scalar_select %p22, %s23, %s24
      %p28 = pneg %p22
      %p29 = scmp.eq.s32.totalorder %s13, 1
      %p30 = por %p28, %p29
      %p31 = scmp.ne.s32.totalorder %s23, %s26
      %p32 = scmp.eq.s32.totalorder %s13, 0
      %p33 = por %p31, %p32
      %p34 = scmp.ne.s32.totalorder %s23, %s26
      %p35 = scmp.eq.s32.totalorder %s18, 1
      %p36 = por %p34, %p35
      %p37 = scmp.ne.s32.totalorder %s26, %s27
      %p38 = scmp.eq.s32.totalorder %s18, 0
      %p39 = por %p37, %p38
      %p40 = scmp.ne.s32.totalorder %s26, %s27
      %p41 = scmp.eq.s32.totalorder %s19, 1
      %p42 = por %p40, %p41
      %p44 = scmp.ne.s32.totalorder %s27, %s43
      %p45 = scmp.eq.s32.totalorder %s19, 0
      %p46 = por %p44, %p45
      %s47 = ssub.s32 %s13, %s20
      %p48 = scmp.eq.s32.totalorder %s47, 0
      %s50 = sadd.s32 %s49, 1
      %s51 = scalar_select %p48, %s49, %s50
      %p54 = pneg %p48
      %p55 = scmp.eq.s32.totalorder %s13, 1
      %p56 = por %p54, %p55
      %p57 = scmp.ne.s32.totalorder %s49, %s52
      %p58 = scmp.eq.s32.totalorder %s13, 0
      %p59 = por %p57, %p58
      %p60 = scmp.ne.s32.totalorder %s49, %s52
      %p61 = scmp.eq.s32.totalorder %s18, 1
      %p62 = por %p60, %p61
      %p63 = scmp.ne.s32.totalorder %s52, %s53
      %p64 = scmp.eq.s32.totalorder %s18, 0
      %p65 = por %p63, %p64
      %p66 = scmp.ne.s32.totalorder %s52, %s53
      %p67 = scmp.eq.s32.totalorder %s19, 1
      %p68 = por %p66, %p67
      %p70 = scmp.ne.s32.totalorder %s53, %s69
      %p71 = scmp.eq.s32.totalorder %s19, 0
      %p72 = por %p70, %p71
      %s74 = sadd.s32 %s73, 1
      %p77 = scmp.eq.s32.totalorder %s13, 1
      %p78 = scmp.ne.s32.totalorder %s73, %s75
      %p79 = scmp.eq.s32.totalorder %s13, 0
      %p80 = por %p78, %p79
      %p81 = scmp.ne.s32.totalorder %s73, %s75
      %p82 = scmp.eq.s32.totalorder %s18, 1
      %p83 = por %p81, %p82
      %p84 = scmp.ne.s32.totalorder %s75, %s76
      %p85 = scmp.eq.s32.totalorder %s18, 0
      %p86 = por %p84, %p85
      %p87 = scmp.ne.s32.totalorder %s75, %s76
      %p88 = scmp.eq.s32.totalorder %s19, 1
      %p89 = por %p87, %p88
      %p91 = scmp.ne.s32.totalorder %s76, %s90
      %p92 = scmp.eq.s32.totalorder %s19, 0
      %p93 = por %p91, %p92
      %s95 = sadd.s32 %s94, 1
      %p98 = scmp.eq.s32.totalorder %s13, 1
      %p99 = scmp.ne.s32.totalorder %s94, %s96
      %p100 = scmp.eq.s32.totalorder %s13, 0
      %p101 = por %p99, %p100
      %p102 = scmp.ne.s32.totalorder %s94, %s96
      %p103 = scmp.eq.s32.totalorder %s18, 1
      %p104 = por %p102, %p103
      %p105 = scmp.ne.s32.totalorder %s96, %s97
      %p106 = scmp.eq.s32.totalorder %s18, 0
      %p107 = por %p105, %p106
      %p108 = scmp.ne.s32.totalorder %s96, %s97
      %p109 = scmp.eq.s32.totalorder %s19, 1
      %p110 = por %p108, %p109
      %p112 = scmp.ne.s32.totalorder %s97, %s111
      %p113 = scmp.eq.s32.totalorder %s19, 0
      %p114 = por %p112, %p113
      %s116 = sadd.s32 %s115, 1
      %p119 = scmp.eq.s32.totalorder %s13, 1
      %p120 = scmp.ne.s32.totalorder %s115, %s117
      %p121 = scmp.eq.s32.totalorder %s13, 0
      %p122 = por %p120, %p121
      %p123 = scmp.ne.s32.totalorder %s115, %s117
      %p124 = scmp.eq.s32.totalorder %s18, 1
      %p125 = por %p123, %p124
      %p126 = scmp.ne.s32.totalorder %s117, %s118
      %p127 = scmp.eq.s32.totalorder %s18, 0
      %p128 = por %p126, %p127
      %p129 = scmp.ne.s32.totalorder %s117, %s118
      %p130 = scmp.eq.s32.totalorder %s19, 1
      %p131 = por %p129, %p130
      %p133 = scmp.ne.s32.totalorder %s118, %s132
      %p134 = scmp.eq.s32.totalorder %s19, 0
      %p135 = por %p133, %p134
      %s137 = sadd.s32 %s136, 1
      %p140 = scmp.eq.s32.totalorder %s13, 1
      %p141 = scmp.ne.s32.totalorder %s136, %s138
      %p142 = scmp.eq.s32.totalorder %s13, 0
      %p143 = por %p141, %p142
      %p144 = scmp.ne.s32.totalorder %s136, %s138
      %p145 = scmp.eq.s32.totalorder %s18, 1
      %p146 = por %p144, %p145
      %p147 = scmp.ne.s32.totalorder %s138, %s139
      %p148 = scmp.eq.s32.totalorder %s18, 0
      %p149 = por %p147, %p148
      %p150 = scmp.ne.s32.totalorder %s138, %s139
      %p151 = scmp.eq.s32.totalorder %s19, 1
      %p152 = por %p150, %p151
      %p154 = scmp.ne.s32.totalorder %s139, %s153
      %p155 = scmp.eq.s32.totalorder %s19, 0
      %p156 = por %p154, %p155
      %s158 = sadd.s32 %s157, 1
      %p161 = scmp.eq.s32.totalorder %s13, 1
      %p162 = scmp.ne.s32.totalorder %s157, %s159
      %p163 = scmp.eq.s32.totalorder %s13, 0
      %p164 = por %p162, %p163
      %p165 = scmp.ne.s32.totalorder %s157, %s159
      %p166 = scmp.eq.s32.totalorder %s18, 1
      %p167 = por %p165, %p166
      %p168 = scmp.ne.s32.totalorder %s159, %s160
      %p169 = scmp.eq.s32.totalorder %s18, 0
      %p170 = por %p168, %p169
      %p171 = scmp.ne.s32.totalorder %s159, %s160
      %p172 = scmp.eq.s32.totalorder %s19, 1
      %p173 = por %p171, %p172
      %p175 = scmp.ne.s32.totalorder %s160, %s174
      %p176 = scmp.eq.s32.totalorder %s19, 0
      %p177 = por %p175, %p176
      %s178 = ssub.s32 %s13, %s20
      %p179 = scmp.eq.s32.totalorder %s178, 0
      %s181 = sadd.s32 %s180, 1
      %s182 = scalar_select %p179, %s180, %s181
      %p185 = pneg %p179
      %p186 = scmp.eq.s32.totalorder %s13, 1
      %p187 = por %p185, %p186
      %p188 = scmp.ne.s32.totalorder %s180, %s183
      %p189 = scmp.eq.s32.totalorder %s13, 0
      %p190 = por %p188, %p189
      %p191 = scmp.ne.s32.totalorder %s180, %s183
      %p192 = scmp.eq.s32.totalorder %s18, 1
      %p193 = por %p191, %p192
      %p194 = scmp.ne.s32.totalorder %s183, %s184
      %p195 = scmp.eq.s32.totalorder %s18, 0
      %p196 = por %p194, %p195
      %p197 = scmp.ne.s32.totalorder %s183, %s184
      %p198 = scmp.eq.s32.totalorder %s19, 1
      %p199 = por %p197, %p198
      %p201 = scmp.ne.s32.totalorder %s184, %s200
      %p202 = scmp.eq.s32.totalorder %s19, 0
      %p203 = por %p201, %p202
      %p204 = scmp.le.s32.totalorder 1, %s13
      %p205 = scmp.lt.s32.totalorder %s13, 3
      %p206 = pnand %p204, %p205
      %p207 = pneg %p206
      // Predicated region
      $region9: #{bottleneck_forward.1} parent=5 // pred_check
        _
      $region10: #{bottleneck_forward.1} parent=5 // pred_check_branch
        %209 = sbr.rel (%p206) target = $region12
      $region11: #{bottleneck_forward.1} parent=5 // pred_region
        %s210 = ssub.s32 %s13, 1
        // Predicated region
        $region13: #{bottleneck_forward.1} parent=11 // pred_check
          %p211 = pneg %p86
        $region14: #{bottleneck_forward.1} parent=11 // pred_check_branch
          %213 = sbr.rel (%p211) target = $region16
        $region15: #{bottleneck_forward.1} parent=11 // pred_region
          _
        $region16: #{bottleneck_forward.1} parent=11 // pred_fallthru
          _
        // Predicated region
        $region17: #{bottleneck_forward.1} parent=11 // pred_check
          %p214 = pneg %p107
        $region18: #{bottleneck_forward.1} parent=11 // pred_check_branch
          %216 = sbr.rel (%p214) target = $region20
        $region19: #{bottleneck_forward.1} parent=11 // pred_region
          _
        $region20: #{bottleneck_forward.1} parent=11 // pred_fallthru
          _
        // Predicated region
        $region21: #{bottleneck_forward.1} parent=11 // pred_check
          %p217 = pneg %p128
        $region22: #{bottleneck_forward.1} parent=11 // pred_check_branch
          %219 = sbr.rel (%p217) target = $region24
        $region23: #{bottleneck_forward.1} parent=11 // pred_region
          _
        $region24: #{bottleneck_forward.1} parent=11 // pred_fallthru
          _
        // Predicated region
        $region25: #{bottleneck_forward.1} parent=11 // pred_check
          %p220 = pneg %p149
        $region26: #{bottleneck_forward.1} parent=11 // pred_check_branch
          %222 = sbr.rel (%p220) target = $region28
        $region27: #{bottleneck_forward.1} parent=11 // pred_region
          _
        $region28: #{bottleneck_forward.1} parent=11 // pred_fallthru
          _
        // Predicated region
        $region29: #{bottleneck_forward.1} parent=11 // pred_check
          %p223 = pneg %p170
        $region30: #{bottleneck_forward.1} parent=11 // pred_check_branch
          %225 = sbr.rel (%p223) target = $region32
        $region31: #{bottleneck_forward.1} parent=11 // pred_region
          _
        $region32: #{bottleneck_forward.1} parent=11 // pred_fallthru
          _
      $region12: #{bottleneck_forward.1} parent=5 // pred_fallthru
        _
      %p226 = scmp.lt.s32.totalorder %s13, 2
      // Predicated region
      $region33: #{bottleneck_forward.1} parent=5 // pred_check
        %p227 = pneg %p226
      $region34: #{bottleneck_forward.1} parent=5 // pred_check_branch
        %229 = sbr.rel (%p227) target = $region36
      $region35: #{bottleneck_forward.1} parent=5 // pred_region
        // Predicated region
        $region37: #{bottleneck_forward.1} parent=35 // pred_check
          %p230 = pneg %p33
        $region38: #{bottleneck_forward.1} parent=35 // pred_check_branch
          %232 = sbr.rel (%p230) target = $region40
        $region39: #{bottleneck_forward.1} parent=35 // pred_region
          %s233 = sand.u32 %s23, 1
          %s234 = sand.u32 %s23, 1
          %s235 = smul.addr %s234, 72
          %s236 = scalar_lea.vmem [#allocation2], %s235
          %s237 = smul.u32 3, %s13
          %s238 = smul.addr %s237, 8
          %s239 = scalar_lea.vmem %s0, %s238
          // Predicated region
          $region41: #{bottleneck_forward.1} parent=39 // pred_check
            _
          $region42: #{bottleneck_forward.1} parent=39 // pred_check_branch
            %241 = sbr.rel (0) target = $region44
          $region43: #{bottleneck_forward.1} parent=39 // pred_region
            // Predicated region
            $region45: #{bottleneck_forward.1} parent=43 // pred_check
              _
            $region46: #{bottleneck_forward.1} parent=43 // pred_check_branch
              %243 = sbr.rel (0) target = $region48
            $region47: #{bottleneck_forward.1} parent=43 // pred_region
              loop: start=0, step=1, limit=1
              $region49: #{bottleneck_forward.1} parent=47 // loop_pre_header
                _
              $region50: #{bottleneck_forward.1} parent=47 // loop_header
                %s245 = sphi 0, %s249
                %p246 = scmp.ge.s32.totalorder %s245, 1
                %s250 = sphi %s239, %s239
                %s251 = sphi %s236, %s236
              $region51: #{bottleneck_forward.1} parent=47 // loop_header_branch
                %248 = sbr.rel (%p246) target = $region55
              $region52: #{bottleneck_forward.1} parent=47 // loop_body
                %v252 = vld [vmem:[%s250] sm:$0xff]
                %253 = vst [vmem:[%s251] sm:$0xff] %v252
                %v254 = vld [vmem:[%s250 + $0x8] sm:$0xff]
                %255 = vst [vmem:[%s251 + $0x8] sm:$0xff] %v254
                %v256 = vld [vmem:[%s250 + $0x10] sm:$0xff]
                %257 = vst [vmem:[%s251 + $0x10] sm:$0xff] %v256
                %v258 = vld [vmem:[%s250 + $0x30] sm:$0xff]
                %259 = vst [vmem:[%s251 + $0x18] sm:$0xff] %v258
                %v260 = vld [vmem:[%s250 + $0x38] sm:$0xff]
                %261 = vst [vmem:[%s251 + $0x20] sm:$0xff] %v260
                %v262 = vld [vmem:[%s250 + $0x40] sm:$0xff]
                %263 = vst [vmem:[%s251 + $0x28] sm:$0xff] %v262
                %v264 = vld [vmem:[%s250 + $0x60] sm:$0xff]
                %265 = vst [vmem:[%s251 + $0x30] sm:$0xff] %v264
                %v266 = vld [vmem:[%s250 + $0x68] sm:$0xff]
                %267 = vst [vmem:[%s251 + $0x38] sm:$0xff] %v266
                %v268 = vld [vmem:[%s250 + $0x70] sm:$0xff]
                %269 = vst [vmem:[%s251 + $0x40] sm:$0xff] %v268
              $region53: #{bottleneck_forward.1} parent=47 // loop_footer
                %s249 = sadd.s32 1, %s245
              $region54: #{bottleneck_forward.1} parent=47 // loop_footer_branch
                %244 = sbr.rel target = $region50
              $region55: #{bottleneck_forward.1} parent=47 // loop_exit
                _
            $region48: #{bottleneck_forward.1} parent=43 // pred_fallthru
              _
            // Predicated region
            $region56: #{bottleneck_forward.1} parent=43 // pred_check
              _
            $region57: #{bottleneck_forward.1} parent=43 // pred_check_branch
              %271 = sbr.rel target = $region59
            $region58: #{bottleneck_forward.1} parent=43 // pred_region
              _
            $region59: #{bottleneck_forward.1} parent=43 // pred_fallthru
              _
          $region44: #{bottleneck_forward.1} parent=39 // pred_fallthru
            _
          %272 = vnop
        $region40: #{bottleneck_forward.1} parent=35 // pred_fallthru
          _
        // Predicated region
        $region60: #{bottleneck_forward.1} parent=35 // pred_check
          %p273 = pneg %p59
        $region61: #{bottleneck_forward.1} parent=35 // pred_check_branch
          %275 = sbr.rel (%p273) target = $region63
        $region62: #{bottleneck_forward.1} parent=35 // pred_region
          %p276 = scmp.lt.s32.totalorder %s13, 1
          %s277 = scalar_select %p276, %s13, 1
          %s278 = smul.addr %s277, 6
          %s279 = smul.addr %s278, 8
          %s280 = scalar_lea.vmem %s1, %s279
        $region63: #{bottleneck_forward.1} parent=35 // pred_fallthru
          _
      $region36: #{bottleneck_forward.1} parent=5 // pred_fallthru
        _
      %p281 = scmp.le.s32.totalorder 1, %s13
      %p282 = scmp.lt.s32.totalorder %s13, 3
      %p283 = pnand %p281, %p282
      %p284 = pneg %p283
      // Predicated region
      $region64: #{bottleneck_forward.1} parent=5 // pred_check
        _
      $region65: #{bottleneck_forward.1} parent=5 // pred_check_branch
        %286 = sbr.rel (%p283) target = $region67
      $region66: #{bottleneck_forward.1} parent=5 // pred_region
        %s287 = ssub.s32 %s13, 1
        %s288 = sand.u32 %s26, 1
        %s289 = sand.u32 %s26, 1
        %s290 = smul.addr %s289, 72
        %s291 = scalar_lea.vmem [#allocation2], %s290
        // Predicated region
        $region68: #{bottleneck_forward.1} parent=66 // pred_check
          %p292 = pneg %p39
        $region69: #{bottleneck_forward.1} parent=66 // pred_check_branch
          %294 = sbr.rel (%p292) target = $region71
        $region70: #{bottleneck_forward.1} parent=66 // pred_region
          _
        $region71: #{bottleneck_forward.1} parent=66 // pred_fallthru
          _
        %s295 = sand.u32 %s26, 1
        %s296 = sand.u32 %s26, 1
        %s297 = smul.addr %s296, 72
        %s298 = scalar_lea.vmem [#allocation2], %s297
        %p299 = pneg %p39
        %p300 = pneg %p36
        %p301 = scmp.lt.s32.totalorder %s18, 1
        %s302 = scalar_select %p301, %s18, 1
        %s303 = smul.addr %s302, 6
        %s304 = smul.addr %s303, 8
        %s305 = scalar_lea.vmem %s1, %s304
        %p306 = pneg %p65
        %p307 = pneg %p62
        %p308 = pneg %p86
        %p309 = pneg %p83
        %p310 = pneg %p107
        %p311 = pneg %p104
        %p312 = pneg %p128
        %p313 = pneg %p125
        %p314 = pneg %p149
        %p315 = pneg %p146
        %p316 = pneg %p170
        %p317 = pneg %p167
        %p318 = pneg %p196
        %p319 = pneg %p193
        %s320 = sand.u32 %s183, 1
        %s321 = sand.u32 %s183, 1
        %s322 = smul.addr %s321, 48
        %s323 = scalar_lea.vmem [#allocation3], %s322
        %s324 = smul.u32 3, %s18
        %p325 = scmp.lt.s32.totalorder %s18, 1
        %s326 = scalar_select %p325, %s18, 1
        %s327 = smul.addr %s326, 6
        %s328 = smul.addr %s327, 8
        %s329 = scalar_lea.vmem %s1, %s328
        %s330 = smul.u32 3, %s18
        %v331 = vld [vmem:[%s291] sm:$0xff]
        %v332 = vld [vmem:[%s291 + $0x8] sm:$0xff]
        %v333 = vld [vmem:[%s291 + $0x10] sm:$0xff]
        %v334 = vld [vmem:[%s291 + $0x18] sm:$0xff]
        %v335 = vld [vmem:[%s291 + $0x20] sm:$0xff]
        %v336 = vld [vmem:[%s291 + $0x28] sm:$0xff]
        %v337 = vld [vmem:[%s291 + $0x30] sm:$0xff]
        %v338 = vld [vmem:[%s291 + $0x38] sm:$0xff]
        %v339 = vld [vmem:[%s291 + $0x40] sm:$0xff]
        %v340 = vld [vmem:[%s329] sm:$0xff]
        %v341 = vld [vmem:[%s329 + $0x8] sm:$0xff]
        %v342 = vld [vmem:[%s329 + $0x10] sm:$0xff]
        %v343 = vld [vmem:[%s329 + $0x18] sm:$0xff]
        %v344 = vld [vmem:[%s329 + $0x20] sm:$0xff]
        %v345 = vld [vmem:[%s329 + $0x28] sm:$0xff]
        %v346 = vld [vmem:[%s2] sm:$0xff]
        %vm347 = vcmask 195584
        %v349 = vsel %vm347, %v346, 0
        %351 = vmatpush.msra.mxu0 0.0
        %352 = vmatpush.msra.mxu0 0.0
        %353 = vmatpush.msra.mxu0 0.0
        %354 = vmatpush.msra.mxu0 0.0
        %355 = vmatpush.msra.mxu0 0.0
        %356 = vmatpush.msra.mxu0 0.0
        %357 = vmatpush.msra.mxu0 0.0
        %358 = vmatpush.msra.mxu0 0.0
        %359 = vmatpush.msra.mxu0 0.0
        %360 = vmatpush.msra.mxu0 0.0
        %361 = vmatpush.msra.mxu0 0.0
        %362 = vmatpush.msra.mxu0 0.0
        %363 = vmatpush.msra.mxu0 0.0
        %364 = vmatpush.msra.mxu0 %v337
        %365 = vmatpush.msra.mxu0 %v334
        %366 = vmatpush.msra.mxu0 %v331
        %367 = vmatmul.f32.gmra.mxu0 %v349
        %v368 = vpop.f32.mrf.mxu0
        %v369 = vadd.f32 0.0, %v368
        %370 = vdwg.mxu0
        %371 = vmatpush.msra.mxu0 0.0
        %372 = vmatpush.msra.mxu0 0.0
        %373 = vmatpush.msra.mxu0 0.0
        %374 = vmatpush.msra.mxu0 0.0
        %375 = vmatpush.msra.mxu0 0.0
        %376 = vmatpush.msra.mxu0 0.0
        %377 = vmatpush.msra.mxu0 0.0
        %378 = vmatpush.msra.mxu0 0.0
        %379 = vmatpush.msra.mxu0 0.0
        %380 = vmatpush.msra.mxu0 0.0
        %381 = vmatpush.msra.mxu0 0.0
        %382 = vmatpush.msra.mxu0 0.0
        %383 = vmatpush.msra.mxu0 0.0
        %384 = vmatpush.msra.mxu0 %v338
        %385 = vmatpush.msra.mxu0 %v335
        %386 = vmatpush.msra.mxu0 %v332
        %387 = vmatmul.f32.gmra.mxu0 %v349
        %v388 = vpop.f32.mrf.mxu0
        %v389 = vadd.f32 0.0, %v388
        %390 = vdwg.mxu0
        %391 = vmatpush.msra.mxu0 0.0
        %392 = vmatpush.msra.mxu0 0.0
        %393 = vmatpush.msra.mxu0 0.0
        %394 = vmatpush.msra.mxu0 0.0
        %395 = vmatpush.msra.mxu0 0.0
        %396 = vmatpush.msra.mxu0 0.0
        %397 = vmatpush.msra.mxu0 0.0
        %398 = vmatpush.msra.mxu0 0.0
        %399 = vmatpush.msra.mxu0 0.0
        %400 = vmatpush.msra.mxu0 0.0
        %401 = vmatpush.msra.mxu0 0.0
        %402 = vmatpush.msra.mxu0 0.0
        %403 = vmatpush.msra.mxu0 0.0
        %404 = vmatpush.msra.mxu0 %v339
        %405 = vmatpush.msra.mxu0 %v336
        %406 = vmatpush.msra.mxu0 %v333
        %407 = vmatmul.f32.gmra.mxu0 %v349
        %v408 = vpop.f32.mrf.mxu0
        %v409 = vadd.f32 0.0, %v408
        %410 = vdwg.mxu0
        %v411 = vmax.f32 %v369, 0.0
        %v412 = vmax.f32 %v389, 0.0
        %v413 = vmax.f32 %v409, 0.0
        %414 = vmatpush.msra.mxu0 0.0
        %415 = vmatpush.msra.mxu0 0.0
        %416 = vmatpush.msra.mxu0 0.0
        %417 = vmatpush.msra.mxu0 0.0
        %418 = vmatpush.msra.mxu0 0.0
        %419 = vmatpush.msra.mxu0 0.0
        %420 = vmatpush.msra.mxu0 0.0
        %421 = vmatpush.msra.mxu0 0.0
        %422 = vmatpush.msra.mxu0 0.0
        %423 = vmatpush.msra.mxu0 0.0
        %424 = vmatpush.msra.mxu0 0.0
        %425 = vmatpush.msra.mxu0 0.0
        %426 = vmatpush.msra.mxu0 0.0
        %427 = vmatpush.msra.mxu0 %v344
        %428 = vmatpush.msra.mxu0 %v342
        %429 = vmatpush.msra.mxu0 %v340
        %430 = vmatmul.f32.gmra.mxu0 %v349
        %v431 = vpop.f32.mrf.mxu0
        %v432 = vadd.f32 0.0, %v431
        %433 = vdwg.mxu0
        %434 = vmatpush.msra.mxu0 0.0
        %435 = vmatpush.msra.mxu0 0.0
        %436 = vmatpush.msra.mxu0 0.0
        %437 = vmatpush.msra.mxu0 0.0
        %438 = vmatpush.msra.mxu0 0.0
        %439 = vmatpush.msra.mxu0 0.0
        %440 = vmatpush.msra.mxu0 0.0
        %441 = vmatpush.msra.mxu0 0.0
        %442 = vmatpush.msra.mxu0 0.0
        %443 = vmatpush.msra.mxu0 0.0
        %444 = vmatpush.msra.mxu0 0.0
        %445 = vmatpush.msra.mxu0 0.0
        %446 = vmatpush.msra.mxu0 0.0
        %447 = vmatpush.msra.mxu0 %v345
        %448 = vmatpush.msra.mxu0 %v343
        %449 = vmatpush.msra.mxu0 %v341
        %450 = vmatmul.f32.gmra.mxu0 %v349
        %v451 = vpop.f32.mrf.mxu0
        %v452 = vadd.f32 0.0, %v451
        %453 = vdwg.mxu0
        %v454 = vmax.f32 %v432, 0.0
        %v455 = vmax.f32 %v452, 0.0
        %v456 = vld [vmem:[%s3] sm:$0xff]
        %s457 = scalar_lea.vmem %s3, 8
        %v458 = vld [vmem:[%s457] sm:$0xff]
        %463 = vrot.lane.b32.xlu0 %v454, 18
        %v464 = vpop.permute.xlu0 %463
        %465 = vrot.lane.b32.xlu0 %v411, 18
        %v466 = vpop.permute.xlu0 %465
        %467 = vrot.lane.b32.xlu0 %v412, 18
        %v468 = vpop.permute.xlu0 %467
        %469 = vrot.lane.b32.xlu0 %v413, 18
        %v470 = vpop.permute.xlu0 %469
        %vm471 = vcmask 146432
        %v472 = vsel %vm471, %v464, %v466
        %v473 = vsel %vm471, %v466, %v468
        %v474 = vsel %vm471, %v468, %v470
        %vm478 = vcmask 64512
        %v480 = vsel %vm478, %v458, 0
        %482 = vmatpush.msra.mxu0 0.0
        %483 = vmatpush.msra.mxu0 0.0
        %484 = vmatpush.msra.mxu0 0.0
        %485 = vmatpush.msra.mxu0 0.0
        %486 = vmatpush.msra.mxu0 0.0
        %487 = vmatpush.msra.mxu0 0.0
        %488 = vmatpush.msra.mxu0 0.0
        %489 = vmatpush.msra.mxu0 0.0
        %490 = vmatpush.msra.mxu0 0.0
        %491 = vmatpush.msra.mxu0 0.0
        %492 = vmatpush.msra.mxu0 0.0
        %493 = vmatpush.msra.mxu0 0.0
        %494 = vmatpush.msra.mxu0 0.0
        %495 = vmatpush.msra.mxu0 0.0
        %496 = vmatpush.msra.mxu0 0.0
        %497 = vmatpush.msra.mxu0 %v472
        %498 = vmatmul.f32.gmra.mxu0 %v480
        %v499 = vpop.f32.mrf.mxu0
        %v500 = vadd.f32 0.0, %v499
        %501 = vdwg.mxu0
        %502 = vmatpush.msra.mxu0 0.0
        %503 = vmatpush.msra.mxu0 0.0
        %504 = vmatpush.msra.mxu0 0.0
        %505 = vmatpush.msra.mxu0 0.0
        %506 = vmatpush.msra.mxu0 0.0
        %507 = vmatpush.msra.mxu0 0.0
        %508 = vmatpush.msra.mxu0 0.0
        %509 = vmatpush.msra.mxu0 0.0
        %510 = vmatpush.msra.mxu0 0.0
        %511 = vmatpush.msra.mxu0 0.0
        %512 = vmatpush.msra.mxu0 0.0
        %513 = vmatpush.msra.mxu0 0.0
        %514 = vmatpush.msra.mxu0 0.0
        %515 = vmatpush.msra.mxu0 0.0
        %516 = vmatpush.msra.mxu0 0.0
        %517 = vmatpush.msra.mxu0 %v473
        %518 = vmatmul.f32.gmra.mxu0 %v480
        %v519 = vpop.f32.mrf.mxu0
        %v520 = vadd.f32 0.0, %v519
        %521 = vdwg.mxu0
        %522 = vmatpush.msra.mxu0 0.0
        %523 = vmatpush.msra.mxu0 0.0
        %524 = vmatpush.msra.mxu0 0.0
        %525 = vmatpush.msra.mxu0 0.0
        %526 = vmatpush.msra.mxu0 0.0
        %527 = vmatpush.msra.mxu0 0.0
        %528 = vmatpush.msra.mxu0 0.0
        %529 = vmatpush.msra.mxu0 0.0
        %530 = vmatpush.msra.mxu0 0.0
        %531 = vmatpush.msra.mxu0 0.0
        %532 = vmatpush.msra.mxu0 0.0
        %533 = vmatpush.msra.mxu0 0.0
        %534 = vmatpush.msra.mxu0 0.0
        %535 = vmatpush.msra.mxu0 0.0
        %536 = vmatpush.msra.mxu0 0.0
        %537 = vmatpush.msra.mxu0 %v474
        %538 = vmatmul.f32.gmra.mxu0 %v480
        %v539 = vpop.f32.mrf.mxu0
        %v540 = vadd.f32 0.0, %v539
        %541 = vdwg.mxu0
        %542 = vrot.lane.b32.xlu0 %v454, 19
        %v543 = vpop.permute.xlu0 %542
        %544 = vrot.lane.b32.xlu0 %v411, 19
        %v545 = vpop.permute.xlu0 %544
        %546 = vrot.lane.b32.xlu0 %v412, 19
        %v547 = vpop.permute.xlu0 %546
        %548 = vrot.lane.b32.xlu0 %v413, 19
        %v549 = vpop.permute.xlu0 %548
        %vm550 = vcmask 154624
        %v551 = vsel %vm550, %v543, %v545
        %v552 = vsel %vm550, %v545, %v547
        %v553 = vsel %vm550, %v547, %v549
        %v558 = vsel %vm478, %v456, 0
        %560 = vmatpush.msra.mxu0 0.0
        %561 = vmatpush.msra.mxu0 0.0
        %562 = vmatpush.msra.mxu0 0.0
        %563 = vmatpush.msra.mxu0 0.0
        %564 = vmatpush.msra.mxu0 0.0
        %565 = vmatpush.msra.mxu0 0.0
        %566 = vmatpush.msra.mxu0 0.0
        %567 = vmatpush.msra.mxu0 0.0
        %568 = vmatpush.msra.mxu0 0.0
        %569 = vmatpush.msra.mxu0 0.0
        %570 = vmatpush.msra.mxu0 0.0
        %571 = vmatpush.msra.mxu0 0.0
        %572 = vmatpush.msra.mxu0 0.0
        %573 = vmatpush.msra.mxu0 0.0
        %574 = vmatpush.msra.mxu0 0.0
        %575 = vmatpush.msra.mxu0 %v551
        %576 = vmatmul.f32.gmra.mxu0 %v558
        %v577 = vpop.f32.mrf.mxu0
        %v578 = vadd.f32 %v500, %v577
        %579 = vdwg.mxu0
        %580 = vmatpush.msra.mxu0 0.0
        %581 = vmatpush.msra.mxu0 0.0
        %582 = vmatpush.msra.mxu0 0.0
        %583 = vmatpush.msra.mxu0 0.0
        %584 = vmatpush.msra.mxu0 0.0
        %585 = vmatpush.msra.mxu0 0.0
        %586 = vmatpush.msra.mxu0 0.0
        %587 = vmatpush.msra.mxu0 0.0
        %588 = vmatpush.msra.mxu0 0.0
        %589 = vmatpush.msra.mxu0 0.0
        %590 = vmatpush.msra.mxu0 0.0
        %591 = vmatpush.msra.mxu0 0.0
        %592 = vmatpush.msra.mxu0 0.0
        %593 = vmatpush.msra.mxu0 0.0
        %594 = vmatpush.msra.mxu0 0.0
        %595 = vmatpush.msra.mxu0 %v552
        %596 = vmatmul.f32.gmra.mxu0 %v558
        %v597 = vpop.f32.mrf.mxu0
        %v598 = vadd.f32 %v520, %v597
        %599 = vdwg.mxu0
        %600 = vmatpush.msra.mxu0 0.0
        %601 = vmatpush.msra.mxu0 0.0
        %602 = vmatpush.msra.mxu0 0.0
        %603 = vmatpush.msra.mxu0 0.0
        %604 = vmatpush.msra.mxu0 0.0
        %605 = vmatpush.msra.mxu0 0.0
        %606 = vmatpush.msra.mxu0 0.0
        %607 = vmatpush.msra.mxu0 0.0
        %608 = vmatpush.msra.mxu0 0.0
        %609 = vmatpush.msra.mxu0 0.0
        %610 = vmatpush.msra.mxu0 0.0
        %611 = vmatpush.msra.mxu0 0.0
        %612 = vmatpush.msra.mxu0 0.0
        %613 = vmatpush.msra.mxu0 0.0
        %614 = vmatpush.msra.mxu0 0.0
        %615 = vmatpush.msra.mxu0 %v553
        %616 = vmatmul.f32.gmra.mxu0 %v558
        %v617 = vpop.f32.mrf.mxu0
        %v618 = vadd.f32 %v540, %v617
        %619 = vdwg.mxu0
        %s620 = scalar_lea.vmem %s3, 16
        %v621 = vld [vmem:[%s620] sm:$0xff]
        %622 = vrot.lane.b32.xlu0 %v454, 17
        %v623 = vpop.permute.xlu0 %622
        %624 = vrot.lane.b32.xlu0 %v411, 17
        %v625 = vpop.permute.xlu0 %624
        %626 = vrot.lane.b32.xlu0 %v412, 17
        %v627 = vpop.permute.xlu0 %626
        %628 = vrot.lane.b32.xlu0 %v413, 17
        %v629 = vpop.permute.xlu0 %628
        %vm630 = vcmask 138240
        %v631 = vsel %vm630, %v623, %v625
        %v632 = vsel %vm630, %v625, %v627
        %v633 = vsel %vm630, %v627, %v629
        %v638 = vsel %vm478, %v621, 0
        %640 = vmatpush.msra.mxu0 0.0
        %641 = vmatpush.msra.mxu0 0.0
        %642 = vmatpush.msra.mxu0 0.0
        %643 = vmatpush.msra.mxu0 0.0
        %644 = vmatpush.msra.mxu0 0.0
        %645 = vmatpush.msra.mxu0 0.0
        %646 = vmatpush.msra.mxu0 0.0
        %647 = vmatpush.msra.mxu0 0.0
        %648 = vmatpush.msra.mxu0 0.0
        %649 = vmatpush.msra.mxu0 0.0
        %650 = vmatpush.msra.mxu0 0.0
        %651 = vmatpush.msra.mxu0 0.0
        %652 = vmatpush.msra.mxu0 0.0
        %653 = vmatpush.msra.mxu0 0.0
        %654 = vmatpush.msra.mxu0 0.0
        %655 = vmatpush.msra.mxu0 %v631
        %656 = vmatmul.f32.gmra.mxu0 %v638
        %v657 = vpop.f32.mrf.mxu0
        %v658 = vadd.f32 0.0, %v657
        %659 = vdwg.mxu0
        %660 = vmatpush.msra.mxu0 0.0
        %661 = vmatpush.msra.mxu0 0.0
        %662 = vmatpush.msra.mxu0 0.0
        %663 = vmatpush.msra.mxu0 0.0
        %664 = vmatpush.msra.mxu0 0.0
        %665 = vmatpush.msra.mxu0 0.0
        %666 = vmatpush.msra.mxu0 0.0
        %667 = vmatpush.msra.mxu0 0.0
        %668 = vmatpush.msra.mxu0 0.0
        %669 = vmatpush.msra.mxu0 0.0
        %670 = vmatpush.msra.mxu0 0.0
        %671 = vmatpush.msra.mxu0 0.0
        %672 = vmatpush.msra.mxu0 0.0
        %673 = vmatpush.msra.mxu0 0.0
        %674 = vmatpush.msra.mxu0 0.0
        %675 = vmatpush.msra.mxu0 %v632
        %676 = vmatmul.f32.gmra.mxu0 %v638
        %v677 = vpop.f32.mrf.mxu0
        %v678 = vadd.f32 0.0, %v677
        %679 = vdwg.mxu0
        %680 = vmatpush.msra.mxu0 0.0
        %681 = vmatpush.msra.mxu0 0.0
        %682 = vmatpush.msra.mxu0 0.0
        %683 = vmatpush.msra.mxu0 0.0
        %684 = vmatpush.msra.mxu0 0.0
        %685 = vmatpush.msra.mxu0 0.0
        %686 = vmatpush.msra.mxu0 0.0
        %687 = vmatpush.msra.mxu0 0.0
        %688 = vmatpush.msra.mxu0 0.0
        %689 = vmatpush.msra.mxu0 0.0
        %690 = vmatpush.msra.mxu0 0.0
        %691 = vmatpush.msra.mxu0 0.0
        %692 = vmatpush.msra.mxu0 0.0
        %693 = vmatpush.msra.mxu0 0.0
        %694 = vmatpush.msra.mxu0 0.0
        %695 = vmatpush.msra.mxu0 %v633
        %696 = vmatmul.f32.gmra.mxu0 %v638
        %v697 = vpop.f32.mrf.mxu0
        %v698 = vadd.f32 0.0, %v697
        %699 = vdwg.mxu0
        %v700 = vadd.f32 %v578, %v658
        %v701 = vadd.f32 %v598, %v678
        %v702 = vadd.f32 %v618, %v698
        %s703 = scalar_lea.vmem %s3, 24
        %v704 = vld [vmem:[%s703] sm:$0xff]
        %705 = vrot.lane.b32.xlu0 %v454, 1
        %v706 = vpop.permute.xlu0 %705
        %707 = vrot.lane.b32.xlu0 %v411, 1
        %v708 = vpop.permute.xlu0 %707
        %709 = vrot.lane.b32.xlu0 %v412, 1
        %v710 = vpop.permute.xlu0 %709
        %711 = vrot.lane.b32.xlu0 %v413, 1
        %v712 = vpop.permute.xlu0 %711
        %vm713 = vcmask 7168
        %v714 = vsel %vm713, %v706, %v708
        %v715 = vsel %vm713, %v708, %v710
        %v716 = vsel %vm713, %v710, %v712
        %v721 = vsel %vm478, %v704, 0
        %723 = vmatpush.msra.mxu0 0.0
        %724 = vmatpush.msra.mxu0 0.0
        %725 = vmatpush.msra.mxu0 0.0
        %726 = vmatpush.msra.mxu0 0.0
        %727 = vmatpush.msra.mxu0 0.0
        %728 = vmatpush.msra.mxu0 0.0
        %729 = vmatpush.msra.mxu0 0.0
        %730 = vmatpush.msra.mxu0 0.0
        %731 = vmatpush.msra.mxu0 0.0
        %732 = vmatpush.msra.mxu0 0.0
        %733 = vmatpush.msra.mxu0 0.0
        %734 = vmatpush.msra.mxu0 0.0
        %735 = vmatpush.msra.mxu0 0.0
        %736 = vmatpush.msra.mxu0 0.0
        %737 = vmatpush.msra.mxu0 0.0
        %738 = vmatpush.msra.mxu0 %v714
        %739 = vmatmul.f32.gmra.mxu0 %v721
        %v740 = vpop.f32.mrf.mxu0
        %v741 = vadd.f32 0.0, %v740
        %742 = vdwg.mxu0
        %743 = vmatpush.msra.mxu0 0.0
        %744 = vmatpush.msra.mxu0 0.0
        %745 = vmatpush.msra.mxu0 0.0
        %746 = vmatpush.msra.mxu0 0.0
        %747 = vmatpush.msra.mxu0 0.0
        %748 = vmatpush.msra.mxu0 0.0
        %749 = vmatpush.msra.mxu0 0.0
        %750 = vmatpush.msra.mxu0 0.0
        %751 = vmatpush.msra.mxu0 0.0
        %752 = vmatpush.msra.mxu0 0.0
        %753 = vmatpush.msra.mxu0 0.0
        %754 = vmatpush.msra.mxu0 0.0
        %755 = vmatpush.msra.mxu0 0.0
        %756 = vmatpush.msra.mxu0 0.0
        %757 = vmatpush.msra.mxu0 0.0
        %758 = vmatpush.msra.mxu0 %v715
        %759 = vmatmul.f32.gmra.mxu0 %v721
        %v760 = vpop.f32.mrf.mxu0
        %v761 = vadd.f32 0.0, %v760
        %762 = vdwg.mxu0
        %763 = vmatpush.msra.mxu0 0.0
        %764 = vmatpush.msra.mxu0 0.0
        %765 = vmatpush.msra.mxu0 0.0
        %766 = vmatpush.msra.mxu0 0.0
        %767 = vmatpush.msra.mxu0 0.0
        %768 = vmatpush.msra.mxu0 0.0
        %769 = vmatpush.msra.mxu0 0.0
        %770 = vmatpush.msra.mxu0 0.0
        %771 = vmatpush.msra.mxu0 0.0
        %772 = vmatpush.msra.mxu0 0.0
        %773 = vmatpush.msra.mxu0 0.0
        %774 = vmatpush.msra.mxu0 0.0
        %775 = vmatpush.msra.mxu0 0.0
        %776 = vmatpush.msra.mxu0 0.0
        %777 = vmatpush.msra.mxu0 0.0
        %778 = vmatpush.msra.mxu0 %v716
        %779 = vmatmul.f32.gmra.mxu0 %v721
        %v780 = vpop.f32.mrf.mxu0
        %v781 = vadd.f32 0.0, %v780
        %782 = vdwg.mxu0
        %v783 = vadd.f32 %v700, %v741
        %v784 = vadd.f32 %v701, %v761
        %v785 = vadd.f32 %v702, %v781
        %s786 = scalar_lea.vmem %s3, 32
        %v787 = vld [vmem:[%s786] sm:$0xff]
        %v789 = vsel %vm478, %v787, 0
        %791 = vmatpush.msra.mxu0 0.0
        %792 = vmatpush.msra.mxu0 0.0
        %793 = vmatpush.msra.mxu0 0.0
        %794 = vmatpush.msra.mxu0 0.0
        %795 = vmatpush.msra.mxu0 0.0
        %796 = vmatpush.msra.mxu0 0.0
        %797 = vmatpush.msra.mxu0 0.0
        %798 = vmatpush.msra.mxu0 0.0
        %799 = vmatpush.msra.mxu0 0.0
        %800 = vmatpush.msra.mxu0 0.0
        %801 = vmatpush.msra.mxu0 0.0
        %802 = vmatpush.msra.mxu0 0.0
        %803 = vmatpush.msra.mxu0 0.0
        %804 = vmatpush.msra.mxu0 0.0
        %805 = vmatpush.msra.mxu0 0.0
        %806 = vmatpush.msra.mxu0 %v411
        %807 = vmatmul.f32.gmra.mxu0 %v789
        %v808 = vpop.f32.mrf.mxu0
        %v809 = vadd.f32 0.0, %v808
        %810 = vdwg.mxu0
        %811 = vmatpush.msra.mxu0 0.0
        %812 = vmatpush.msra.mxu0 0.0
        %813 = vmatpush.msra.mxu0 0.0
        %814 = vmatpush.msra.mxu0 0.0
        %815 = vmatpush.msra.mxu0 0.0
        %816 = vmatpush.msra.mxu0 0.0
        %817 = vmatpush.msra.mxu0 0.0
        %818 = vmatpush.msra.mxu0 0.0
        %819 = vmatpush.msra.mxu0 0.0
        %820 = vmatpush.msra.mxu0 0.0
        %821 = vmatpush.msra.mxu0 0.0
        %822 = vmatpush.msra.mxu0 0.0
        %823 = vmatpush.msra.mxu0 0.0
        %824 = vmatpush.msra.mxu0 0.0
        %825 = vmatpush.msra.mxu0 0.0
        %826 = vmatpush.msra.mxu0 %v412
        %827 = vmatmul.f32.gmra.mxu0 %v789
        %v828 = vpop.f32.mrf.mxu0
        %v829 = vadd.f32 0.0, %v828
        %830 = vdwg.mxu0
        %831 = vmatpush.msra.mxu0 0.0
        %832 = vmatpush.msra.mxu0 0.0
        %833 = vmatpush.msra.mxu0 0.0
        %834 = vmatpush.msra.mxu0 0.0
        %835 = vmatpush.msra.mxu0 0.0
        %836 = vmatpush.msra.mxu0 0.0
        %837 = vmatpush.msra.mxu0 0.0
        %838 = vmatpush.msra.mxu0 0.0
        %839 = vmatpush.msra.mxu0 0.0
        %840 = vmatpush.msra.mxu0 0.0
        %841 = vmatpush.msra.mxu0 0.0
        %842 = vmatpush.msra.mxu0 0.0
        %843 = vmatpush.msra.mxu0 0.0
        %844 = vmatpush.msra.mxu0 0.0
        %845 = vmatpush.msra.mxu0 0.0
        %846 = vmatpush.msra.mxu0 %v413
        %847 = vmatmul.f32.gmra.mxu0 %v789
        %v848 = vpop.f32.mrf.mxu0
        %v849 = vadd.f32 0.0, %v848
        %850 = vdwg.mxu0
        %v851 = vadd.f32 %v783, %v809
        %v852 = vadd.f32 %v784, %v829
        %v853 = vadd.f32 %v785, %v849
        %s854 = scalar_lea.vmem %s3, 40
        %v855 = vld [vmem:[%s854] sm:$0xff]
        %857 = vrot.lane.b32.xlu0 %v411, 127
        %v858 = vpop.permute.xlu0 %857
        %859 = vrot.lane.b32.xlu0 %v412, 127
        %v860 = vpop.permute.xlu0 %859
        %861 = vrot.lane.b32.xlu0 %v413, 127
        %v862 = vpop.permute.xlu0 %861
        %863 = vrot.lane.b32.xlu0 %v455, 127
        %v864 = vpop.permute.xlu0 %863
        %vm865 = vcmask 1039360
        %v866 = vsel %vm865, %v858, %v860
        %v867 = vsel %vm865, %v860, %v862
        %v868 = vsel %vm865, %v862, %v864
        %v873 = vsel %vm478, %v855, 0
        %875 = vmatpush.msra.mxu0 0.0
        %876 = vmatpush.msra.mxu0 0.0
        %877 = vmatpush.msra.mxu0 0.0
        %878 = vmatpush.msra.mxu0 0.0
        %879 = vmatpush.msra.mxu0 0.0
        %880 = vmatpush.msra.mxu0 0.0
        %881 = vmatpush.msra.mxu0 0.0
        %882 = vmatpush.msra.mxu0 0.0
        %883 = vmatpush.msra.mxu0 0.0
        %884 = vmatpush.msra.mxu0 0.0
        %885 = vmatpush.msra.mxu0 0.0
        %886 = vmatpush.msra.mxu0 0.0
        %887 = vmatpush.msra.mxu0 0.0
        %888 = vmatpush.msra.mxu0 0.0
        %889 = vmatpush.msra.mxu0 0.0
        %890 = vmatpush.msra.mxu0 %v866
        %891 = vmatmul.f32.gmra.mxu0 %v873
        %v892 = vpop.f32.mrf.mxu0
        %v893 = vadd.f32 0.0, %v892
        %894 = vdwg.mxu0
        %895 = vmatpush.msra.mxu0 0.0
        %896 = vmatpush.msra.mxu0 0.0
        %897 = vmatpush.msra.mxu0 0.0
        %898 = vmatpush.msra.mxu0 0.0
        %899 = vmatpush.msra.mxu0 0.0
        %900 = vmatpush.msra.mxu0 0.0
        %901 = vmatpush.msra.mxu0 0.0
        %902 = vmatpush.msra.mxu0 0.0
        %903 = vmatpush.msra.mxu0 0.0
        %904 = vmatpush.msra.mxu0 0.0
        %905 = vmatpush.msra.mxu0 0.0
        %906 = vmatpush.msra.mxu0 0.0
        %907 = vmatpush.msra.mxu0 0.0
        %908 = vmatpush.msra.mxu0 0.0
        %909 = vmatpush.msra.mxu0 0.0
        %910 = vmatpush.msra.mxu0 %v867
        %911 = vmatmul.f32.gmra.mxu0 %v873
        %v912 = vpop.f32.mrf.mxu0
        %v913 = vadd.f32 0.0, %v912
        %914 = vdwg.mxu0
        %915 = vmatpush.msra.mxu0 0.0
        %916 = vmatpush.msra.mxu0 0.0
        %917 = vmatpush.msra.mxu0 0.0
        %918 = vmatpush.msra.mxu0 0.0
        %919 = vmatpush.msra.mxu0 0.0
        %920 = vmatpush.msra.mxu0 0.0
        %921 = vmatpush.msra.mxu0 0.0
        %922 = vmatpush.msra.mxu0 0.0
        %923 = vmatpush.msra.mxu0 0.0
        %924 = vmatpush.msra.mxu0 0.0
        %925 = vmatpush.msra.mxu0 0.0
        %926 = vmatpush.msra.mxu0 0.0
        %927 = vmatpush.msra.mxu0 0.0
        %928 = vmatpush.msra.mxu0 0.0
        %929 = vmatpush.msra.mxu0 0.0
        %930 = vmatpush.msra.mxu0 %v868
        %931 = vmatmul.f32.gmra.mxu0 %v873
        %v932 = vpop.f32.mrf.mxu0
        %v933 = vadd.f32 0.0, %v932
        %934 = vdwg.mxu0
        %v935 = vadd.f32 %v851, %v893
        %v936 = vadd.f32 %v852, %v913
        %v937 = vadd.f32 %v853, %v933
        %s938 = scalar_lea.vmem %s3, 48
        %v939 = vld [vmem:[%s938] sm:$0xff]
        %940 = vrot.lane.b32.xlu0 %v411, 111
        %v941 = vpop.permute.xlu0 %940
        %942 = vrot.lane.b32.xlu0 %v412, 111
        %v943 = vpop.permute.xlu0 %942
        %944 = vrot.lane.b32.xlu0 %v413, 111
        %v945 = vpop.permute.xlu0 %944
        %946 = vrot.lane.b32.xlu0 %v455, 111
        %v947 = vpop.permute.xlu0 %946
        %vm948 = vcmask 908288
        %v949 = vsel %vm948, %v941, %v943
        %v950 = vsel %vm948, %v943, %v945
        %v951 = vsel %vm948, %v945, %v947
        %v956 = vsel %vm478, %v939, 0
        %958 = vmatpush.msra.mxu0 0.0
        %959 = vmatpush.msra.mxu0 0.0
        %960 = vmatpush.msra.mxu0 0.0
        %961 = vmatpush.msra.mxu0 0.0
        %962 = vmatpush.msra.mxu0 0.0
        %963 = vmatpush.msra.mxu0 0.0
        %964 = vmatpush.msra.mxu0 0.0
        %965 = vmatpush.msra.mxu0 0.0
        %966 = vmatpush.msra.mxu0 0.0
        %967 = vmatpush.msra.mxu0 0.0
        %968 = vmatpush.msra.mxu0 0.0
        %969 = vmatpush.msra.mxu0 0.0
        %970 = vmatpush.msra.mxu0 0.0
        %971 = vmatpush.msra.mxu0 0.0
        %972 = vmatpush.msra.mxu0 0.0
        %973 = vmatpush.msra.mxu0 %v949
        %974 = vmatmul.f32.gmra.mxu0 %v956
        %v975 = vpop.f32.mrf.mxu0
        %v976 = vadd.f32 0.0, %v975
        %977 = vdwg.mxu0
        %978 = vmatpush.msra.mxu0 0.0
        %979 = vmatpush.msra.mxu0 0.0
        %980 = vmatpush.msra.mxu0 0.0
        %981 = vmatpush.msra.mxu0 0.0
        %982 = vmatpush.msra.mxu0 0.0
        %983 = vmatpush.msra.mxu0 0.0
        %984 = vmatpush.msra.mxu0 0.0
        %985 = vmatpush.msra.mxu0 0.0
        %986 = vmatpush.msra.mxu0 0.0
        %987 = vmatpush.msra.mxu0 0.0
        %988 = vmatpush.msra.mxu0 0.0
        %989 = vmatpush.msra.mxu0 0.0
        %990 = vmatpush.msra.mxu0 0.0
        %991 = vmatpush.msra.mxu0 0.0
        %992 = vmatpush.msra.mxu0 0.0
        %993 = vmatpush.msra.mxu0 %v950
        %994 = vmatmul.f32.gmra.mxu0 %v956
        %v995 = vpop.f32.mrf.mxu0
        %v996 = vadd.f32 0.0, %v995
        %997 = vdwg.mxu0
        %998 = vmatpush.msra.mxu0 0.0
        %999 = vmatpush.msra.mxu0 0.0
        %1000 = vmatpush.msra.mxu0 0.0
        %1001 = vmatpush.msra.mxu0 0.0
        %1002 = vmatpush.msra.mxu0 0.0
        %1003 = vmatpush.msra.mxu0 0.0
        %1004 = vmatpush.msra.mxu0 0.0
        %1005 = vmatpush.msra.mxu0 0.0
        %1006 = vmatpush.msra.mxu0 0.0
        %1007 = vmatpush.msra.mxu0 0.0
        %1008 = vmatpush.msra.mxu0 0.0
        %1009 = vmatpush.msra.mxu0 0.0
        %1010 = vmatpush.msra.mxu0 0.0
        %1011 = vmatpush.msra.mxu0 0.0
        %1012 = vmatpush.msra.mxu0 0.0
        %1013 = vmatpush.msra.mxu0 %v951
        %1014 = vmatmul.f32.gmra.mxu0 %v956
        %v1015 = vpop.f32.mrf.mxu0
        %v1016 = vadd.f32 0.0, %v1015
        %1017 = vdwg.mxu0
        %v1018 = vadd.f32 %v935, %v976
        %v1019 = vadd.f32 %v936, %v996
        %v1020 = vadd.f32 %v937, %v1016
        %s1021 = scalar_lea.vmem %s3, 56
        %v1022 = vld [vmem:[%s1021] sm:$0xff]
        %1023 = vrot.lane.b32.xlu0 %v411, 110
        %v1024 = vpop.permute.xlu0 %1023
        %1025 = vrot.lane.b32.xlu0 %v412, 110
        %v1026 = vpop.permute.xlu0 %1025
        %1027 = vrot.lane.b32.xlu0 %v413, 110
        %v1028 = vpop.permute.xlu0 %1027
        %1029 = vrot.lane.b32.xlu0 %v455, 110
        %v1030 = vpop.permute.xlu0 %1029
        %vm1031 = vcmask 900096
        %v1032 = vsel %vm1031, %v1024, %v1026
        %v1033 = vsel %vm1031, %v1026, %v1028
        %v1034 = vsel %vm1031, %v1028, %v1030
        %v1039 = vsel %vm478, %v1022, 0
        %1041 = vmatpush.msra.mxu0 0.0
        %1042 = vmatpush.msra.mxu0 0.0
        %1043 = vmatpush.msra.mxu0 0.0
        %1044 = vmatpush.msra.mxu0 0.0
        %1045 = vmatpush.msra.mxu0 0.0
        %1046 = vmatpush.msra.mxu0 0.0
        %1047 = vmatpush.msra.mxu0 0.0
        %1048 = vmatpush.msra.mxu0 0.0
        %1049 = vmatpush.msra.mxu0 0.0
        %1050 = vmatpush.msra.mxu0 0.0
        %1051 = vmatpush.msra.mxu0 0.0
        %1052 = vmatpush.msra.mxu0 0.0
        %1053 = vmatpush.msra.mxu0 0.0
        %1054 = vmatpush.msra.mxu0 0.0
        %1055 = vmatpush.msra.mxu0 0.0
        %1056 = vmatpush.msra.mxu0 %v1032
        %1057 = vmatmul.f32.gmra.mxu0 %v1039
        %v1058 = vpop.f32.mrf.mxu0
        %v1059 = vadd.f32 0.0, %v1058
        %1060 = vdwg.mxu0
        %1061 = vmatpush.msra.mxu0 0.0
        %1062 = vmatpush.msra.mxu0 0.0
        %1063 = vmatpush.msra.mxu0 0.0
        %1064 = vmatpush.msra.mxu0 0.0
        %1065 = vmatpush.msra.mxu0 0.0
        %1066 = vmatpush.msra.mxu0 0.0
        %1067 = vmatpush.msra.mxu0 0.0
        %1068 = vmatpush.msra.mxu0 0.0
        %1069 = vmatpush.msra.mxu0 0.0
        %1070 = vmatpush.msra.mxu0 0.0
        %1071 = vmatpush.msra.mxu0 0.0
        %1072 = vmatpush.msra.mxu0 0.0
        %1073 = vmatpush.msra.mxu0 0.0
        %1074 = vmatpush.msra.mxu0 0.0
        %1075 = vmatpush.msra.mxu0 0.0
        %1076 = vmatpush.msra.mxu0 %v1033
        %1077 = vmatmul.f32.gmra.mxu0 %v1039
        %v1078 = vpop.f32.mrf.mxu0
        %v1079 = vadd.f32 0.0, %v1078
        %1080 = vdwg.mxu0
        %1081 = vmatpush.msra.mxu0 0.0
        %1082 = vmatpush.msra.mxu0 0.0
        %1083 = vmatpush.msra.mxu0 0.0
        %1084 = vmatpush.msra.mxu0 0.0
        %1085 = vmatpush.msra.mxu0 0.0
        %1086 = vmatpush.msra.mxu0 0.0
        %1087 = vmatpush.msra.mxu0 0.0
        %1088 = vmatpush.msra.mxu0 0.0
        %1089 = vmatpush.msra.mxu0 0.0
        %1090 = vmatpush.msra.mxu0 0.0
        %1091 = vmatpush.msra.mxu0 0.0
        %1092 = vmatpush.msra.mxu0 0.0
        %1093 = vmatpush.msra.mxu0 0.0
        %1094 = vmatpush.msra.mxu0 0.0
        %1095 = vmatpush.msra.mxu0 0.0
        %1096 = vmatpush.msra.mxu0 %v1034
        %1097 = vmatmul.f32.gmra.mxu0 %v1039
        %v1098 = vpop.f32.mrf.mxu0
        %v1099 = vadd.f32 0.0, %v1098
        %1100 = vdwg.mxu0
        %v1101 = vadd.f32 %v1018, %v1059
        %v1102 = vadd.f32 %v1019, %v1079
        %v1103 = vadd.f32 %v1020, %v1099
        %s1104 = scalar_lea.vmem %s3, 64
        %v1105 = vld [vmem:[%s1104] sm:$0xff]
        %1106 = vrot.lane.b32.xlu0 %v411, 109
        %v1107 = vpop.permute.xlu0 %1106
        %1108 = vrot.lane.b32.xlu0 %v412, 109
        %v1109 = vpop.permute.xlu0 %1108
        %1110 = vrot.lane.b32.xlu0 %v413, 109
        %v1111 = vpop.permute.xlu0 %1110
        %1112 = vrot.lane.b32.xlu0 %v455, 109
        %v1113 = vpop.permute.xlu0 %1112
        %vm1114 = vcmask 891904
        %v1115 = vsel %vm1114, %v1107, %v1109
        %v1116 = vsel %vm1114, %v1109, %v1111
        %v1117 = vsel %vm1114, %v1111, %v1113
        %v1122 = vsel %vm478, %v1105, 0
        %1124 = vmatpush.msra.mxu0 0.0
        %1125 = vmatpush.msra.mxu0 0.0
        %1126 = vmatpush.msra.mxu0 0.0
        %1127 = vmatpush.msra.mxu0 0.0
        %1128 = vmatpush.msra.mxu0 0.0
        %1129 = vmatpush.msra.mxu0 0.0
        %1130 = vmatpush.msra.mxu0 0.0
        %1131 = vmatpush.msra.mxu0 0.0
        %1132 = vmatpush.msra.mxu0 0.0
        %1133 = vmatpush.msra.mxu0 0.0
        %1134 = vmatpush.msra.mxu0 0.0
        %1135 = vmatpush.msra.mxu0 0.0
        %1136 = vmatpush.msra.mxu0 0.0
        %1137 = vmatpush.msra.mxu0 0.0
        %1138 = vmatpush.msra.mxu0 0.0
        %1139 = vmatpush.msra.mxu0 %v1115
        %1140 = vmatmul.f32.gmra.mxu0 %v1122
        %v1141 = vpop.f32.mrf.mxu0
        %v1142 = vadd.f32 0.0, %v1141
        %1143 = vdwg.mxu0
        %1144 = vmatpush.msra.mxu0 0.0
        %1145 = vmatpush.msra.mxu0 0.0
        %1146 = vmatpush.msra.mxu0 0.0
        %1147 = vmatpush.msra.mxu0 0.0
        %1148 = vmatpush.msra.mxu0 0.0
        %1149 = vmatpush.msra.mxu0 0.0
        %1150 = vmatpush.msra.mxu0 0.0
        %1151 = vmatpush.msra.mxu0 0.0
        %1152 = vmatpush.msra.mxu0 0.0
        %1153 = vmatpush.msra.mxu0 0.0
        %1154 = vmatpush.msra.mxu0 0.0
        %1155 = vmatpush.msra.mxu0 0.0
        %1156 = vmatpush.msra.mxu0 0.0
        %1157 = vmatpush.msra.mxu0 0.0
        %1158 = vmatpush.msra.mxu0 0.0
        %1159 = vmatpush.msra.mxu0 %v1116
        %1160 = vmatmul.f32.gmra.mxu0 %v1122
        %v1161 = vpop.f32.mrf.mxu0
        %v1162 = vadd.f32 0.0, %v1161
        %1163 = vdwg.mxu0
        %1164 = vmatpush.msra.mxu0 0.0
        %1165 = vmatpush.msra.mxu0 0.0
        %1166 = vmatpush.msra.mxu0 0.0
        %1167 = vmatpush.msra.mxu0 0.0
        %1168 = vmatpush.msra.mxu0 0.0
        %1169 = vmatpush.msra.mxu0 0.0
        %1170 = vmatpush.msra.mxu0 0.0
        %1171 = vmatpush.msra.mxu0 0.0
        %1172 = vmatpush.msra.mxu0 0.0
        %1173 = vmatpush.msra.mxu0 0.0
        %1174 = vmatpush.msra.mxu0 0.0
        %1175 = vmatpush.msra.mxu0 0.0
        %1176 = vmatpush.msra.mxu0 0.0
        %1177 = vmatpush.msra.mxu0 0.0
        %1178 = vmatpush.msra.mxu0 0.0
        %1179 = vmatpush.msra.mxu0 %v1117
        %1180 = vmatmul.f32.gmra.mxu0 %v1122
        %v1181 = vpop.f32.mrf.mxu0
        %v1182 = vadd.f32 0.0, %v1181
        %1183 = vdwg.mxu0
        %v1184 = vadd.f32 %v1101, %v1142
        %v1185 = vadd.f32 %v1102, %v1162
        %v1186 = vadd.f32 %v1103, %v1182
        %v1187 = vld [vmem:[%s4] sm:$0xff]
        %1189 = vset.pattern.permute.xlu0 0
        %1190 = vperm.xlu0 %1189, %v1187
        %v1191 = vpop.permute.xlu0 %1190
        %v1193 = vadd.f32 %v1184, %v1191
        %v1194 = vadd.f32 %v1185, %v1191
        %v1195 = vadd.f32 %v1186, %v1191
        %v1196 = vmax.f32 %v1193, 0.0
        %v1197 = vmax.f32 %v1194, 0.0
        %v1198 = vmax.f32 %v1195, 0.0
        %v1199 = vld [vmem:[%s5] sm:$0xff]
        %v1200 = vld [vmem:[%s5 + $0x8] sm:$0xff]
        %v1201 = vld [vmem:[%s6] sm:$0xff]
        %v1202 = vld [vmem:[%s6 + $0x8] sm:$0xff]
        %1204 = vset.pattern.permute.xlu0 0
        %1205 = vperm.xlu0 %1204, %v1201
        %v1206 = vpop.permute.xlu0 %1205
        %1209 = vset.pattern.permute.xlu0 0
        %1210 = vperm.xlu0 %1209, %v1202
        %v1211 = vpop.permute.xlu0 %1210
        %v1214 = vsel %vm478, %v1199, 0
        %v1217 = vsel %vm478, %v1200, 0
        %1219 = vmatpush.msra.mxu0 0.0
        %1220 = vmatpush.msra.mxu0 0.0
        %1221 = vmatpush.msra.mxu0 0.0
        %1222 = vmatpush.msra.mxu0 0.0
        %1223 = vmatpush.msra.mxu0 0.0
        %1224 = vmatpush.msra.mxu0 0.0
        %1225 = vmatpush.msra.mxu0 0.0
        %1226 = vmatpush.msra.mxu0 0.0
        %1227 = vmatpush.msra.mxu0 0.0
        %1228 = vmatpush.msra.mxu0 0.0
        %1229 = vmatpush.msra.mxu0 0.0
        %1230 = vmatpush.msra.mxu0 0.0
        %1231 = vmatpush.msra.mxu0 0.0
        %1232 = vmatpush.msra.mxu0 0.0
        %1233 = vmatpush.msra.mxu0 0.0
        %1234 = vmatpush.msra.mxu0 %v1196
        %1235 = vmatmul.f32.gmra.mxu0 %v1214
        %v1236 = vpop.f32.mrf.mxu0
        %v1237 = vadd.f32 %v1206, %v1236
        %1238 = vmatmul.f32.gmra.mxu0 %v1217
        %v1239 = vpop.f32.mrf.mxu0
        %v1240 = vadd.f32 %v1211, %v1239
        %1241 = vdwg.mxu0
        %1242 = vmatpush.msra.mxu0 0.0
        %1243 = vmatpush.msra.mxu0 0.0
        %1244 = vmatpush.msra.mxu0 0.0
        %1245 = vmatpush.msra.mxu0 0.0
        %1246 = vmatpush.msra.mxu0 0.0
        %1247 = vmatpush.msra.mxu0 0.0
        %1248 = vmatpush.msra.mxu0 0.0
        %1249 = vmatpush.msra.mxu0 0.0
        %1250 = vmatpush.msra.mxu0 0.0
        %1251 = vmatpush.msra.mxu0 0.0
        %1252 = vmatpush.msra.mxu0 0.0
        %1253 = vmatpush.msra.mxu0 0.0
        %1254 = vmatpush.msra.mxu0 0.0
        %1255 = vmatpush.msra.mxu0 0.0
        %1256 = vmatpush.msra.mxu0 0.0
        %1257 = vmatpush.msra.mxu0 %v1197
        %1258 = vmatmul.f32.gmra.mxu0 %v1214
        %v1259 = vpop.f32.mrf.mxu0
        %v1260 = vadd.f32 %v1206, %v1259
        %1261 = vmatmul.f32.gmra.mxu0 %v1217
        %v1262 = vpop.f32.mrf.mxu0
        %v1263 = vadd.f32 %v1211, %v1262
        %1264 = vdwg.mxu0
        %1265 = vmatpush.msra.mxu0 0.0
        %1266 = vmatpush.msra.mxu0 0.0
        %1267 = vmatpush.msra.mxu0 0.0
        %1268 = vmatpush.msra.mxu0 0.0
        %1269 = vmatpush.msra.mxu0 0.0
        %1270 = vmatpush.msra.mxu0 0.0
        %1271 = vmatpush.msra.mxu0 0.0
        %1272 = vmatpush.msra.mxu0 0.0
        %1273 = vmatpush.msra.mxu0 0.0
        %1274 = vmatpush.msra.mxu0 0.0
        %1275 = vmatpush.msra.mxu0 0.0
        %1276 = vmatpush.msra.mxu0 0.0
        %1277 = vmatpush.msra.mxu0 0.0
        %1278 = vmatpush.msra.mxu0 0.0
        %1279 = vmatpush.msra.mxu0 0.0
        %1280 = vmatpush.msra.mxu0 %v1198
        %1281 = vmatmul.f32.gmra.mxu0 %v1214
        %v1282 = vpop.f32.mrf.mxu0
        %v1283 = vadd.f32 %v1206, %v1282
        %1284 = vmatmul.f32.gmra.mxu0 %v1217
        %v1285 = vpop.f32.mrf.mxu0
        %v1286 = vadd.f32 %v1211, %v1285
        %1287 = vdwg.mxu0
        %v1288 = vadd.f32 %v1237, %v331
        %v1289 = vadd.f32 %v1260, %v332
        %v1290 = vadd.f32 %v1283, %v333
        %v1291 = vadd.f32 %v1240, %v334
        %v1292 = vadd.f32 %v1263, %v335
        %v1293 = vadd.f32 %v1286, %v336
        %v1294 = vmax.f32 %v1288, 0.0
        %v1295 = vmax.f32 %v1289, 0.0
        %v1296 = vmax.f32 %v1290, 0.0
        %v1297 = vmax.f32 %v1291, 0.0
        %v1298 = vmax.f32 %v1292, 0.0
        %v1299 = vmax.f32 %v1293, 0.0
        %1300 = vst [vmem:[%s323] sm:$0xff] %v1294
        %1301 = vst [vmem:[%s323 + $0x8] sm:$0xff] %v1295
        %1302 = vst [vmem:[%s323 + $0x10] sm:$0xff] %v1296
        %1303 = vst [vmem:[%s323 + $0x18] sm:$0xff] %v1297
        %1304 = vst [vmem:[%s323 + $0x20] sm:$0xff] %v1298
        %1305 = vst [vmem:[%s323 + $0x28] sm:$0xff] %v1299
        %s1306 = sand.u32 %s183, 1
        %s1307 = sand.u32 %s183, 1
        %s1308 = smul.addr %s1307, 48
        %s1309 = scalar_lea.vmem [#allocation3], %s1308
        // Predicated region
        $region72: #{bottleneck_forward.1} parent=66 // pred_check
          %p1310 = pneg %p193
        $region73: #{bottleneck_forward.1} parent=66 // pred_check_branch
          %1312 = sbr.rel (%p1310) target = $region75
        $region74: #{bottleneck_forward.1} parent=66 // pred_region
          %s1313 = smul.u32 3, %s18
          %s1314 = smul.addr %s1313, 8
          %s1315 = scalar_lea.vmem %s7, %s1314
          // Predicated region
          $region76: #{bottleneck_forward.1} parent=74 // pred_check
            _
          $region77: #{bottleneck_forward.1} parent=74 // pred_check_branch
            %1317 = sbr.rel (0) target = $region79
          $region78: #{bottleneck_forward.1} parent=74 // pred_region
            // Predicated region
            $region80: #{bottleneck_forward.1} parent=78 // pred_check
              _
            $region81: #{bottleneck_forward.1} parent=78 // pred_check_branch
              %1319 = sbr.rel (0) target = $region83
            $region82: #{bottleneck_forward.1} parent=78 // pred_region
              loop: start=0, step=1, limit=1
              $region84: #{bottleneck_forward.1} parent=82 // loop_pre_header
                _
              $region85: #{bottleneck_forward.1} parent=82 // loop_header
                %s1321 = sphi 0, %s1325
                %p1322 = scmp.ge.s32.totalorder %s1321, 1
                %s1326 = sphi %s1309, %s1309
                %s1327 = sphi %s1315, %s1315
              $region86: #{bottleneck_forward.1} parent=82 // loop_header_branch
                %1324 = sbr.rel (%p1322) target = $region90
              $region87: #{bottleneck_forward.1} parent=82 // loop_body
                %v1328 = vld [vmem:[%s1326] sm:$0xff]
                %1329 = vst [vmem:[%s1327] sm:$0xff] %v1328
                %v1330 = vld [vmem:[%s1326 + $0x8] sm:$0xff]
                %1331 = vst [vmem:[%s1327 + $0x8] sm:$0xff] %v1330
                %v1332 = vld [vmem:[%s1326 + $0x10] sm:$0xff]
                %1333 = vst [vmem:[%s1327 + $0x10] sm:$0xff] %v1332
                %v1334 = vld [vmem:[%s1326 + $0x18] sm:$0xff]
                %1335 = vst [vmem:[%s1327 + $0x30] sm:$0xff] %v1334
                %v1336 = vld [vmem:[%s1326 + $0x20] sm:$0xff]
                %1337 = vst [vmem:[%s1327 + $0x38] sm:$0xff] %v1336
                %v1338 = vld [vmem:[%s1326 + $0x28] sm:$0xff]
                %1339 = vst [vmem:[%s1327 + $0x40] sm:$0xff] %v1338
              $region88: #{bottleneck_forward.1} parent=82 // loop_footer
                %s1325 = sadd.s32 1, %s1321
              $region89: #{bottleneck_forward.1} parent=82 // loop_footer_branch
                %1320 = sbr.rel target = $region85
              $region90: #{bottleneck_forward.1} parent=82 // loop_exit
                _
            $region83: #{bottleneck_forward.1} parent=78 // pred_fallthru
              _
            // Predicated region
            $region91: #{bottleneck_forward.1} parent=78 // pred_check
              _
            $region92: #{bottleneck_forward.1} parent=78 // pred_check_branch
              %1341 = sbr.rel target = $region94
            $region93: #{bottleneck_forward.1} parent=78 // pred_region
              _
            $region94: #{bottleneck_forward.1} parent=78 // pred_fallthru
              _
          $region79: #{bottleneck_forward.1} parent=74 // pred_fallthru
            _
          %1342 = vnop
        $region75: #{bottleneck_forward.1} parent=66 // pred_fallthru
          _
      $region67: #{bottleneck_forward.1} parent=5 // pred_fallthru
        _
      %p1343 = scmp.le.s32.totalorder 2, %s13
      // Predicated region
      $region95: #{bottleneck_forward.1} parent=5 // pred_check
        %p1344 = pneg %p1343
      $region96: #{bottleneck_forward.1} parent=5 // pred_check_branch
        %1346 = sbr.rel (%p1344) target = $region98
      $region97: #{bottleneck_forward.1} parent=5 // pred_region
        %s1347 = ssub.s32 %s13, 2
        // Predicated region
        $region99: #{bottleneck_forward.1} parent=97 // pred_check
          %p1348 = pneg %p199
        $region100: #{bottleneck_forward.1} parent=97 // pred_check_branch
          %1350 = sbr.rel (%p1348) target = $region102
        $region101: #{bottleneck_forward.1} parent=97 // pred_region
          %s1351 = sand.u32 %s184, 1
          %s1352 = sand.u32 %s184, 1
          %s1353 = smul.addr %s1352, 48
          %s1354 = scalar_lea.vmem [#allocation3], %s1353
        $region102: #{bottleneck_forward.1} parent=97 // pred_fallthru
          _
      $region98: #{bottleneck_forward.1} parent=5 // pred_fallthru
        _
    $region6: #{bottleneck_forward.1} parent=1 // loop_footer
      %s17 = sadd.s32 1, %s13
    $region7: #{bottleneck_forward.1} parent=1 // loop_footer_branch
      %12 = sbr.rel target = $region3
    $region8: #{bottleneck_forward.1} parent=1 // loop_exit
      _

</llo_original>
